<compile_context>
chip_gen: v7x
topology: tpu7x:2x2x1
jax: 0.10.0
libtpu: 0.0.40
codegen_flags: <defaults>
</compile_context>

<pallas_src>
import functools

import jax
import jax.numpy as jnp
from jax import lax
from jax.experimental import pallas as pl
from jax.experimental.pallas import tpu as pltpu

KERNEL_SIZES = (5, 9, 13)


def _act(t, kind):
    if kind == "silu":
        return t * jax.nn.sigmoid(t)
    if kind == "lrelu":
        return jnp.maximum(t, 0.1 * t)   # LeakyReLU(0.1), exact
    raise ValueError(f"unsupported activation: {kind}")


# ---------------------------------------------------------------------------
# Fused SPPBottleneck kernel (one batch item per grid step, no scratch)
# ---------------------------------------------------------------------------
def _spp_fused_kernel(x_ref, rows_ref, w1_ref, bias1_ref, w2_ref, bias2_ref,
                      o_ref, *, H, W, act):
    # x_ref    : (1, Cin, H*W) f32        rows_ref : (1, H*W) f32 row index
    # w1_ref   : (Ch, Cin)   bf16         bias1_ref: (Ch, 1)   f32
    # w2_ref   : (Cout, 4Ch) bf16         bias2_ref: (Cout, 1) f32
    # o_ref    : (1, Cout, H*W) f32
    HW = H * W
    Ch = w1_ref.shape[0]
    f32 = jnp.float32
    bf16 = jnp.bfloat16
    NEG = -jnp.inf

    rows = rows_ref[...]                               # (1, HW) image row ids

    # ---- masked circular-shift helpers -------------------------------------
    # Validity masks are derived from the SAME pltpu.roll applied to the row
    # index vector, so they stay consistent with the data shift regardless of
    # the hardware rotate direction (the pooling program is mirror symmetric).
    h_valid_cache = {}
    v_valid_cache = {}

    def h_valid(k):            # shifted-by-k-columns source is in the same row
        if k not in h_valid_cache:
            h_valid_cache[k] = pltpu.roll(rows, (-k) % HW, axis=1) == rows
        return h_valid_cache[k]

    def v_valid(d):            # shifted-by-d-rows source is inside the image
        if d not in v_valid_cache:
            r = pltpu.roll(rows, (-d * W) % HW, axis=1)
            v_valid_cache[d] = jnp.abs(r - rows) == float(abs(d))
        return v_valid_cache[d]

    def hshift(a, k):          # a'[:, i] = a[:, i+k] if same image row else -inf
        return jnp.where(h_valid(k), pltpu.roll(a, (-k) % HW, axis=1), NEG)

    def vshift(a, d):          # a'[:, i] = a[:, i+d*W] if row in image else -inf
        return jnp.where(v_valid(d), pltpu.roll(a, (-d * W) % HW, axis=1), NEG)

    # ---- conv1 (1x1, BN folded, bf16 MXU) + activation ----------------------
    xb = x_ref[0, :, :].astype(bf16)                                # (Cin, HW)
    y = jnp.dot(w1_ref[...], xb, preferred_element_type=f32) + bias1_ref[...]
    y = _act(y, act)                                                # (Ch, HW) f32

    # ---- conv2, identity branch (concat never materialized) ----------------
    z = jnp.dot(w2_ref[:, 0:Ch], y.astype(bf16),
                preferred_element_type=f32) + bias2_ref[...]

    # ---- horizontal max pass: shared forward/backward doubling chains ------
    f2 = jnp.maximum(y, hshift(y, 1))            # cols [c, c+1]
    f4 = jnp.maximum(f2, hshift(f2, 2))          # cols [c, c+3]
    r2 = jnp.maximum(f2, hshift(f2, 1))          # cols [c, c+2]
    r4 = jnp.maximum(f4, hshift(f4, 1))          # cols [c, c+4]
    r6 = jnp.maximum(f4, hshift(f4, 3))          # cols [c, c+6]
    g2 = jnp.maximum(y, hshift(y, -1))           # mirrored (left arms)
    g4 = jnp.maximum(g2, hshift(g2, -2))
    l2 = jnp.maximum(g2, hshift(g2, -1))         # cols [c-2, c]
    l4 = jnp.maximum(g4, hshift(g4, -1))         # cols [c-4, c]
    l6 = jnp.maximum(g4, hshift(g4, -3))         # cols [c-6, c]
    h5 = jnp.maximum(r2, l2)                     # cols [c-2, c+2]
    h9 = jnp.maximum(r4, l4)                     # cols [c-4, c+4]
    h13 = jnp.maximum(r6, l6)                    # cols [c-6, c+6]

    # ---- vertical pass per window; conv2 accumulated branch-by-branch ------
    def vert(a, radius):
        if radius == 2:
            f = jnp.maximum(a, vshift(a, 1))
            rr = jnp.maximum(f, vshift(f, 1))               # rows [r, r+2]
            g = jnp.maximum(a, vshift(a, -1))
            ll = jnp.maximum(g, vshift(g, -1))              # rows [r-2, r]
        else:
            f = jnp.maximum(a, vshift(a, 1))
            f = jnp.maximum(f, vshift(f, 2))                # rows [r, r+3]
            rr = jnp.maximum(f, vshift(f, radius - 3))      # rows [r, r+radius]
            g = jnp.maximum(a, vshift(a, -1))
            g = jnp.maximum(g, vshift(g, -2))
            ll = jnp.maximum(g, vshift(g, -(radius - 3)))   # rows [r-radius, r]
        return jnp.maximum(rr, ll)

    p5 = vert(h5, 2)                                        # 5x5 max pool
    z = z + jnp.dot(w2_ref[:, Ch:2 * Ch], p5.astype(bf16),
                    preferred_element_type=f32)
    p9 = vert(h9, 4)                                        # 9x9 max pool
    z = z + jnp.dot(w2_ref[:, 2 * Ch:3 * Ch], p9.astype(bf16),
                    preferred_element_type=f32)
    p13 = vert(h13, 6)                                      # 13x13 max pool
    z = z + jnp.dot(w2_ref[:, 3 * Ch:4 * Ch], p13.astype(bf16),
                    preferred_element_type=f32)

    z = _act(z, act)
    o_ref[0, :, :] = z.astype(o_ref.dtype)                  # lane-dense store


# ---------------------------------------------------------------------------
# Host wrapper (NCHW in / NCHW out, only free reshapes)
# ---------------------------------------------------------------------------
def _vmem_limit_bytes(Cin, Ch, Cout, HW):
    io = 2 * (Cin * HW * 4) + 2 * (Cout * HW * 4)            # double-buffered
    wgt = 2 * ((Ch * Cin + Cout * 4 * Ch) * 2 + (Ch + Cout) * 4 + HW * 4)
    live = 12 * Ch * HW * 4                                   # live f32 slabs
    est = int((io + wgt + live) * 1.5) + (4 << 20)
    try:
        cap = int(pltpu.get_tpu_info().vmem_capacity_bytes)
    except Exception:
        cap = 64 << 20                                        # v7x-safe fallback
    return max(32 << 20, min(est, cap - (4 << 20)))


def spp_bottleneck(x_nchw, w1, b1, w2, b2, *, act="lrelu"):
    N, Cin, H, W = x_nchw.shape
    Ch = w1.shape[0]
    Cout = w2.shape[0]
    HW = H * W
    if H < 7:
        raise ValueError("SPP pooling kernel requires feature-map height >= 7")

    x2 = x_nchw.reshape(N, Cin, HW)          # contiguous reshape, no copy
    rows = (jnp.arange(HW, dtype=jnp.int32) // W).astype(jnp.float32)
    rows = rows.reshape(1, HW)
    w1b = w1.astype(jnp.bfloat16)
    w2b = w2.astype(jnp.bfloat16)
    b1c = b1.astype(jnp.float32).reshape(Ch, 1)
    b2c = b2.astype(jnp.float32).reshape(Cout, 1)

    flops = 2 * N * HW * (Ch * Cin + Cout * 4 * Ch)
    transc = N * HW * (Ch + Cout) if act == "silu" else 0
    bytes_accessed = (N * Cin * HW + N * Cout * HW + HW) * 4 \
        + (Ch * Cin + Cout * 4 * Ch) * 2 + (Ch + Cout) * 4

    kernel = functools.partial(_spp_fused_kernel, H=H, W=W, act=act)
    out = pl.pallas_call(
        kernel,
        out_shape=jax.ShapeDtypeStruct((N, Cout, HW), jnp.float32),
        grid=(N,),
        in_specs=[
            pl.BlockSpec((1, Cin, HW), lambda b: (b, 0, 0)),
            pl.BlockSpec((1, HW), lambda b: (0, 0)),
            pl.BlockSpec((Ch, Cin), lambda b: (0, 0)),
            pl.BlockSpec((Ch, 1), lambda b: (0, 0)),
            pl.BlockSpec((Cout, 4 * Ch), lambda b: (0, 0)),
            pl.BlockSpec((Cout, 1), lambda b: (0, 0)),
        ],
        out_specs=pl.BlockSpec((1, Cout, HW), lambda b: (b, 0, 0)),
        compiler_params=pltpu.CompilerParams(
            dimension_semantics=("parallel",),
            vmem_limit_bytes=_vmem_limit_bytes(Cin, Ch, Cout, HW),
        ),
        cost_estimate=pl.CostEstimate(
            flops=flops, transcendentals=transc, bytes_accessed=bytes_accessed),
    )(x2, rows, w1b, b1c, w2b, b2c)
    return out.reshape(N, Cout, H, W)


# ---------------------------------------------------------------------------
# Parameter setup (deterministic) + exact BN folding (eval mode)
# ---------------------------------------------------------------------------
def fold_bn(w, gamma, beta, mean, var, eps=1e-5):
    # w: (Cout, Cin) 1x1 conv kernel; conv bias=False in BaseConv.
    scale = gamma / jnp.sqrt(var + eps)
    return w * scale[:, None], (beta - mean * scale)[:, None]


def make_params(key, in_channels, out_channels):
    hidden = in_channels // 2
    conv2_in = hidden * (len(KERNEL_SIZES) + 1)
    k1, k2 = jax.random.split(key)
    w1 = jax.random.normal(k1, (hidden, in_channels), jnp.float32) * 0.1
    w2 = jax.random.normal(k2, (out_channels, conv2_in), jnp.float32) * 0.1
    # BatchNorm2d at PyTorch init, eval mode: gamma=1, beta=0, mean=0, var=1.
    g1 = jnp.ones((hidden,), jnp.float32)
    z1 = jnp.zeros((hidden,), jnp.float32)
    g2 = jnp.ones((out_channels,), jnp.float32)
    z2 = jnp.zeros((out_channels,), jnp.float32)
    w1f, b1f = fold_bn(w1, g1, z1, z1, g1)
    w2f, b2f = fold_bn(w2, g2, z2, z2, g2)
    return w1f, b1f, w2f, b2f


# ---------------------------------------------------------------------------
# Pure-JAX reference for verification
# ---------------------------------------------------------------------------
def reference(x_nchw, w1, b1, w2, b2, *, act, matmul_dtype=jnp.float32):
    q = lambda a: a.astype(matmul_dtype).astype(jnp.float32)
    hi = lax.Precision.HIGHEST
    y = jnp.einsum("oc,nchw->nohw", q(w1), q(x_nchw), precision=hi)
    y = _act(y + b1.reshape(1, -1, 1, 1), act)
    branches = [y]
    for ks in KERNEL_SIZES:
        p = ks // 2
        branches.append(
            lax.reduce_window(
                y, -jnp.inf, lax.max,
                (1, 1, ks, ks), (1, 1, 1, 1),
                [(0, 0), (0, 0), (p, p), (p, p)],
            )
        )
    cat = jnp.concatenate(branches, axis=1)
    z = jnp.einsum("oc,nchw->nohw", q(w2), q(cat), precision=hi)
    return _act(z + b2.reshape(1, -1, 1, 1), act)


if __name__ == "__main__":
    key = jax.random.PRNGKey(0)
    k_x, k_p = jax.random.split(key)

    N, C_IN, H, W = 2, 8, 16, 16
    C_OUT = 8

    x = jax.random.normal(k_x, (N, C_IN, H, W), jnp.float32)
    w1, b1, w2, b2 = make_params(k_p, C_IN, C_OUT)

    for act in ("lrelu", "silu"):       # Darknet.dark5 uses 'lrelu'
        fwd = jax.jit(functools.partial(spp_bottleneck, act=act))
        out = jax.block_until_ready(fwd(x, w1, b1, w2, b2))
        assert out.shape == (N, C_OUT, H, W), out.shape

        # Tight check against a reference using the same bf16 matmul operands.
        ref_b = reference(x, w1, b1, w2, b2, act=act, matmul_dtype=jnp.bfloat16)
        err_b = float(jnp.max(jnp.abs(out - ref_b)))
        assert err_b < 2e-3, (act, err_b)

        # Loose check against the exact f32 reference (bf16-MXU rounding only).
        ref_f = reference(x, w1, b1, w2, b2, act=act, matmul_dtype=jnp.float32)
        err_f = float(jnp.max(jnp.abs(out - ref_f)))
        assert err_f < 5e-2, (act, err_f)

    print("KERNEL_OK")
</pallas_src>

<mosaic_0001>
module attributes {stable_mosaic.version = 11 : i64} {
  func.func @_spp_fused_kernel(%arg0: i32, %arg1: memref<1x8x256xf32, #tpu.memory_space<vmem>>, %arg2: memref<1x256xf32, #tpu.memory_space<vmem>>, %arg3: memref<4x8xbf16, #tpu.memory_space<vmem>>, %arg4: memref<4x1xf32, #tpu.memory_space<vmem>>, %arg5: memref<8x16xbf16, #tpu.memory_space<vmem>>, %arg6: memref<8x1xf32, #tpu.memory_space<vmem>>, %arg7: memref<1x8x256xf32, #tpu.memory_space<vmem>>) attributes {dimension_semantics = [#tpu.dimension_semantics<parallel>], iteration_bounds = array<i64: 2>, scalar_prefetch = 0 : i64, scratch_operands = 0 : i64, tpu.core_type = #tpu.core_type<tc>, window_params = [{transform_indices = @transform_0, window_bounds = array<i64: 1, 8, 256>}, {pipeline_mode = #tpu.pipeline_mode<synchronous>, transform_indices = @transform_1, window_bounds = array<i64: 1, 256>}, {pipeline_mode = #tpu.pipeline_mode<synchronous>, transform_indices = @transform_2, window_bounds = array<i64: 4, 8>}, {pipeline_mode = #tpu.pipeline_mode<synchronous>, transform_indices = @transform_3, window_bounds = array<i64: 4, 1>}, {pipeline_mode = #tpu.pipeline_mode<synchronous>, transform_indices = @transform_4, window_bounds = array<i64: 8, 16>}, {pipeline_mode = #tpu.pipeline_mode<synchronous>, transform_indices = @transform_5, window_bounds = array<i64: 8, 1>}, {transform_indices = @transform_6, window_bounds = array<i64: 1, 8, 256>}]} {
    %c0 = arith.constant 0 : index
    %c0_0 = arith.constant 0 : index
    %0 = vector.load %arg2[%c0, %c0_0] : memref<1x256xf32, #tpu.memory_space<vmem>>, vector<1x256xf32>
    %c0_1 = arith.constant 0 : index
    %c0_2 = arith.constant 0 : index
    %c0_3 = arith.constant 0 : index
    %1 = vector.load %arg1[%c0_1, %c0_2, %c0_3] : memref<1x8x256xf32, #tpu.memory_space<vmem>>, vector<1x8x256xf32>
    %2 = vector.shape_cast %1 : vector<1x8x256xf32> to vector<8x256xf32>
    %3 = arith.truncf %2 : vector<8x256xf32> to vector<8x256xbf16>
    %c0_4 = arith.constant 0 : index
    %c0_5 = arith.constant 0 : index
    %4 = vector.load %arg3[%c0_4, %c0_5] : memref<4x8xbf16, #tpu.memory_space<vmem>>, vector<4x8xbf16>
    %cst = arith.constant dense<0.000000e+00> : vector<4x256xf32>
    %5 = tpu.matmul %4, %3, %cst {dimension_numbers = #tpu.dot_dimension_numbers<[1], [0], [0], [1], [0, 0, 1, 1], [], []>} : vector<4x8xbf16>, vector<8x256xbf16>, vector<4x256xf32> -> vector<4x256xf32>
    %c0_6 = arith.constant 0 : index
    %c0_7 = arith.constant 0 : index
    %6 = vector.load %arg4[%c0_6, %c0_7] : memref<4x1xf32, #tpu.memory_space<vmem>>, vector<4x1xf32>
    %7 = vector.broadcast %6 : vector<4x1xf32> to vector<4x256xf32>
    %8 = arith.addf %5, %7 : vector<4x256xf32>
    %cst_8 = arith.constant 1.000000e-01 : f32
    %9 = vector.broadcast %cst_8 : f32 to vector<4x256xf32>
    %10 = arith.mulf %9, %8 : vector<4x256xf32>
    %11 = arith.maximumf %8, %10 : vector<4x256xf32>
    %c0_9 = arith.constant 0 : index
    %c0_10 = arith.constant 0 : index
    %12 = vector.load %arg5[%c0_9, %c0_10] : memref<8x16xbf16, #tpu.memory_space<vmem>>, vector<8x4xbf16>
    %13 = arith.truncf %11 : vector<4x256xf32> to vector<4x256xbf16>
    %cst_11 = arith.constant dense<0.000000e+00> : vector<8x256xf32>
    %14 = tpu.matmul %12, %13, %cst_11 {dimension_numbers = #tpu.dot_dimension_numbers<[1], [0], [0], [1], [0, 0, 1, 1], [], []>} : vector<8x4xbf16>, vector<4x256xbf16>, vector<8x256xf32> -> vector<8x256xf32>
    %c0_12 = arith.constant 0 : index
    %c0_13 = arith.constant 0 : index
    %15 = vector.load %arg6[%c0_12, %c0_13] : memref<8x1xf32, #tpu.memory_space<vmem>>, vector<8x1xf32>
    %16 = vector.broadcast %15 : vector<8x1xf32> to vector<8x256xf32>
    %17 = arith.addf %14, %16 : vector<8x256xf32>
    %c255_i32 = arith.constant 255 : i32
    %18 = tpu.dynamic_rotate %0 by %c255_i32 dim 1 : vector<1x256xf32>, i32 -> vector<1x256xf32>
    %19 = arith.cmpf oeq, %18, %0 : vector<1x256xf32>
    %c255_i32_14 = arith.constant 255 : i32
    %20 = tpu.dynamic_rotate %11 by %c255_i32_14 dim 1 : vector<4x256xf32>, i32 -> vector<4x256xf32>
    %cst_15 = arith.constant 0xFF800000 : f32
    %21 = vector.shape_cast %19 : vector<1x256xi1> to vector<1x256xi1>
    %22 = vector.broadcast %21 : vector<1x256xi1> to vector<4x256xi1>
    %23 = vector.broadcast %cst_15 : f32 to vector<4x256xf32>
    %24 = arith.select %22, %20, %23 : vector<4x256xi1>, vector<4x256xf32>
    %25 = arith.maximumf %11, %24 : vector<4x256xf32>
    %c254_i32 = arith.constant 254 : i32
    %26 = tpu.dynamic_rotate %0 by %c254_i32 dim 1 : vector<1x256xf32>, i32 -> vector<1x256xf32>
    %27 = arith.cmpf oeq, %26, %0 : vector<1x256xf32>
    %c254_i32_16 = arith.constant 254 : i32
    %28 = tpu.dynamic_rotate %25 by %c254_i32_16 dim 1 : vector<4x256xf32>, i32 -> vector<4x256xf32>
    %cst_17 = arith.constant 0xFF800000 : f32
    %29 = vector.shape_cast %27 : vector<1x256xi1> to vector<1x256xi1>
    %30 = vector.broadcast %29 : vector<1x256xi1> to vector<4x256xi1>
    %31 = vector.broadcast %cst_17 : f32 to vector<4x256xf32>
    %32 = arith.select %30, %28, %31 : vector<4x256xi1>, vector<4x256xf32>
    %33 = arith.maximumf %25, %32 : vector<4x256xf32>
    %c255_i32_18 = arith.constant 255 : i32
    %34 = tpu.dynamic_rotate %25 by %c255_i32_18 dim 1 : vector<4x256xf32>, i32 -> vector<4x256xf32>
    %cst_19 = arith.constant 0xFF800000 : f32
    %35 = vector.shape_cast %19 : vector<1x256xi1> to vector<1x256xi1>
    %36 = vector.broadcast %35 : vector<1x256xi1> to vector<4x256xi1>
    %37 = vector.broadcast %cst_19 : f32 to vector<4x256xf32>
    %38 = arith.select %36, %34, %37 : vector<4x256xi1>, vector<4x256xf32>
    %39 = arith.maximumf %25, %38 : vector<4x256xf32>
    %c255_i32_20 = arith.constant 255 : i32
    %40 = tpu.dynamic_rotate %33 by %c255_i32_20 dim 1 : vector<4x256xf32>, i32 -> vector<4x256xf32>
    %cst_21 = arith.constant 0xFF800000 : f32
    %41 = vector.shape_cast %19 : vector<1x256xi1> to vector<1x256xi1>
    %42 = vector.broadcast %41 : vector<1x256xi1> to vector<4x256xi1>
    %43 = vector.broadcast %cst_21 : f32 to vector<4x256xf32>
    %44 = arith.select %42, %40, %43 : vector<4x256xi1>, vector<4x256xf32>
    %45 = arith.maximumf %33, %44 : vector<4x256xf32>
    %c253_i32 = arith.constant 253 : i32
    %46 = tpu.dynamic_rotate %0 by %c253_i32 dim 1 : vector<1x256xf32>, i32 -> vector<1x256xf32>
    %47 = arith.cmpf oeq, %46, %0 : vector<1x256xf32>
    %c253_i32_22 = arith.constant 253 : i32
    %48 = tpu.dynamic_rotate %33 by %c253_i32_22 dim 1 : vector<4x256xf32>, i32 -> vector<4x256xf32>
    %cst_23 = arith.constant 0xFF800000 : f32
    %49 = vector.shape_cast %47 : vector<1x256xi1> to vector<1x256xi1>
    %50 = vector.broadcast %49 : vector<1x256xi1> to vector<4x256xi1>
    %51 = vector.broadcast %cst_23 : f32 to vector<4x256xf32>
    %52 = arith.select %50, %48, %51 : vector<4x256xi1>, vector<4x256xf32>
    %53 = arith.maximumf %33, %52 : vector<4x256xf32>
    %c1_i32 = arith.constant 1 : i32
    %54 = tpu.dynamic_rotate %0 by %c1_i32 dim 1 : vector<1x256xf32>, i32 -> vector<1x256xf32>
    %55 = arith.cmpf oeq, %54, %0 : vector<1x256xf32>
    %c1_i32_24 = arith.constant 1 : i32
    %56 = tpu.dynamic_rotate %11 by %c1_i32_24 dim 1 : vector<4x256xf32>, i32 -> vector<4x256xf32>
    %cst_25 = arith.constant 0xFF800000 : f32
    %57 = vector.shape_cast %55 : vector<1x256xi1> to vector<1x256xi1>
    %58 = vector.broadcast %57 : vector<1x256xi1> to vector<4x256xi1>
    %59 = vector.broadcast %cst_25 : f32 to vector<4x256xf32>
    %60 = arith.select %58, %56, %59 : vector<4x256xi1>, vector<4x256xf32>
    %61 = arith.maximumf %11, %60 : vector<4x256xf32>
    %c2_i32 = arith.constant 2 : i32
    %62 = tpu.dynamic_rotate %0 by %c2_i32 dim 1 : vector<1x256xf32>, i32 -> vector<1x256xf32>
    %63 = arith.cmpf oeq, %62, %0 : vector<1x256xf32>
    %c2_i32_26 = arith.constant 2 : i32
    %64 = tpu.dynamic_rotate %61 by %c2_i32_26 dim 1 : vector<4x256xf32>, i32 -> vector<4x256xf32>
    %cst_27 = arith.constant 0xFF800000 : f32
    %65 = vector.shape_cast %63 : vector<1x256xi1> to vector<1x256xi1>
    %66 = vector.broadcast %65 : vector<1x256xi1> to vector<4x256xi1>
    %67 = vector.broadcast %cst_27 : f32 to vector<4x256xf32>
    %68 = arith.select %66, %64, %67 : vector<4x256xi1>, vector<4x256xf32>
    %69 = arith.maximumf %61, %68 : vector<4x256xf32>
    %c1_i32_28 = arith.constant 1 : i32
    %70 = tpu.dynamic_rotate %61 by %c1_i32_28 dim 1 : vector<4x256xf32>, i32 -> vector<4x256xf32>
    %cst_29 = arith.constant 0xFF800000 : f32
    %71 = vector.shape_cast %55 : vector<1x256xi1> to vector<1x256xi1>
    %72 = vector.broadcast %71 : vector<1x256xi1> to vector<4x256xi1>
    %73 = vector.broadcast %cst_29 : f32 to vector<4x256xf32>
    %74 = arith.select %72, %70, %73 : vector<4x256xi1>, vector<4x256xf32>
    %75 = arith.maximumf %61, %74 : vector<4x256xf32>
    %c1_i32_30 = arith.constant 1 : i32
    %76 = tpu.dynamic_rotate %69 by %c1_i32_30 dim 1 : vector<4x256xf32>, i32 -> vector<4x256xf32>
    %cst_31 = arith.constant 0xFF800000 : f32
    %77 = vector.shape_cast %55 : vector<1x256xi1> to vector<1x256xi1>
    %78 = vector.broadcast %77 : vector<1x256xi1> to vector<4x256xi1>
    %79 = vector.broadcast %cst_31 : f32 to vector<4x256xf32>
    %80 = arith.select %78, %76, %79 : vector<4x256xi1>, vector<4x256xf32>
    %81 = arith.maximumf %69, %80 : vector<4x256xf32>
    %c3_i32 = arith.constant 3 : i32
    %82 = tpu.dynamic_rotate %0 by %c3_i32 dim 1 : vector<1x256xf32>, i32 -> vector<1x256xf32>
    %83 = arith.cmpf oeq, %82, %0 : vector<1x256xf32>
    %c3_i32_32 = arith.constant 3 : i32
    %84 = tpu.dynamic_rotate %69 by %c3_i32_32 dim 1 : vector<4x256xf32>, i32 -> vector<4x256xf32>
    %cst_33 = arith.constant 0xFF800000 : f32
    %85 = vector.shape_cast %83 : vector<1x256xi1> to vector<1x256xi1>
    %86 = vector.broadcast %85 : vector<1x256xi1> to vector<4x256xi1>
    %87 = vector.broadcast %cst_33 : f32 to vector<4x256xf32>
    %88 = arith.select %86, %84, %87 : vector<4x256xi1>, vector<4x256xf32>
    %89 = arith.maximumf %69, %88 : vector<4x256xf32>
    %90 = arith.maximumf %39, %75 : vector<4x256xf32>
    %91 = arith.maximumf %45, %81 : vector<4x256xf32>
    %92 = arith.maximumf %53, %89 : vector<4x256xf32>
    %c240_i32 = arith.constant 240 : i32
    %93 = tpu.dynamic_rotate %0 by %c240_i32 dim 1 : vector<1x256xf32>, i32 -> vector<1x256xf32>
    %94 = arith.subf %93, %0 : vector<1x256xf32>
    %95 = math.absf %94 : vector<1x256xf32>
    %cst_34 = arith.constant 1.000000e+00 : f32
    %96 = vector.broadcast %cst_34 : f32 to vector<1x256xf32>
    %97 = arith.cmpf oeq, %95, %96 : vector<1x256xf32>
    %c240_i32_35 = arith.constant 240 : i32
    %98 = tpu.dynamic_rotate %90 by %c240_i32_35 dim 1 : vector<4x256xf32>, i32 -> vector<4x256xf32>
    %cst_36 = arith.constant 0xFF800000 : f32
    %99 = vector.shape_cast %97 : vector<1x256xi1> to vector<1x256xi1>
    %100 = vector.broadcast %99 : vector<1x256xi1> to vector<4x256xi1>
    %101 = vector.broadcast %cst_36 : f32 to vector<4x256xf32>
    %102 = arith.select %100, %98, %101 : vector<4x256xi1>, vector<4x256xf32>
    %103 = arith.maximumf %90, %102 : vector<4x256xf32>
    %c240_i32_37 = arith.constant 240 : i32
    %104 = tpu.dynamic_rotate %103 by %c240_i32_37 dim 1 : vector<4x256xf32>, i32 -> vector<4x256xf32>
    %cst_38 = arith.constant 0xFF800000 : f32
    %105 = vector.shape_cast %97 : vector<1x256xi1> to vector<1x256xi1>
    %106 = vector.broadcast %105 : vector<1x256xi1> to vector<4x256xi1>
    %107 = vector.broadcast %cst_38 : f32 to vector<4x256xf32>
    %108 = arith.select %106, %104, %107 : vector<4x256xi1>, vector<4x256xf32>
    %109 = arith.maximumf %103, %108 : vector<4x256xf32>
    %c16_i32 = arith.constant 16 : i32
    %110 = tpu.dynamic_rotate %0 by %c16_i32 dim 1 : vector<1x256xf32>, i32 -> vector<1x256xf32>
    %111 = arith.subf %110, %0 : vector<1x256xf32>
    %112 = math.absf %111 : vector<1x256xf32>
    %cst_39 = arith.constant 1.000000e+00 : f32
    %113 = vector.broadcast %cst_39 : f32 to vector<1x256xf32>
    %114 = arith.cmpf oeq, %112, %113 : vector<1x256xf32>
    %c16_i32_40 = arith.constant 16 : i32
    %115 = tpu.dynamic_rotate %90 by %c16_i32_40 dim 1 : vector<4x256xf32>, i32 -> vector<4x256xf32>
    %cst_41 = arith.constant 0xFF800000 : f32
    %116 = vector.shape_cast %114 : vector<1x256xi1> to vector<1x256xi1>
    %117 = vector.broadcast %116 : vector<1x256xi1> to vector<4x256xi1>
    %118 = vector.broadcast %cst_41 : f32 to vector<4x256xf32>
    %119 = arith.select %117, %115, %118 : vector<4x256xi1>, vector<4x256xf32>
    %120 = arith.maximumf %90, %119 : vector<4x256xf32>
    %c16_i32_42 = arith.constant 16 : i32
    %121 = tpu.dynamic_rotate %120 by %c16_i32_42 dim 1 : vector<4x256xf32>, i32 -> vector<4x256xf32>
    %cst_43 = arith.constant 0xFF800000 : f32
    %122 = vector.shape_cast %114 : vector<1x256xi1> to vector<1x256xi1>
    %123 = vector.broadcast %122 : vector<1x256xi1> to vector<4x256xi1>
    %124 = vector.broadcast %cst_43 : f32 to vector<4x256xf32>
    %125 = arith.select %123, %121, %124 : vector<4x256xi1>, vector<4x256xf32>
    %126 = arith.maximumf %120, %125 : vector<4x256xf32>
    %127 = arith.maximumf %109, %126 : vector<4x256xf32>
    %c0_44 = arith.constant 0 : index
    %c4 = arith.constant 4 : index
    %128 = vector.load %arg5[%c0_44, %c4] : memref<8x16xbf16, #tpu.memory_space<vmem>>, vector<8x4xbf16>
    %129 = arith.truncf %127 : vector<4x256xf32> to vector<4x256xbf16>
    %cst_45 = arith.constant dense<0.000000e+00> : vector<8x256xf32>
    %130 = tpu.matmul %128, %129, %cst_45 {dimension_numbers = #tpu.dot_dimension_numbers<[1], [0], [0], [1], [0, 0, 1, 1], [], []>} : vector<8x4xbf16>, vector<4x256xbf16>, vector<8x256xf32> -> vector<8x256xf32>
    %131 = arith.addf %17, %130 : vector<8x256xf32>
    %c240_i32_46 = arith.constant 240 : i32
    %132 = tpu.dynamic_rotate %91 by %c240_i32_46 dim 1 : vector<4x256xf32>, i32 -> vector<4x256xf32>
    %cst_47 = arith.constant 0xFF800000 : f32
    %133 = vector.shape_cast %97 : vector<1x256xi1> to vector<1x256xi1>
    %134 = vector.broadcast %133 : vector<1x256xi1> to vector<4x256xi1>
    %135 = vector.broadcast %cst_47 : f32 to vector<4x256xf32>
    %136 = arith.select %134, %132, %135 : vector<4x256xi1>, vector<4x256xf32>
    %137 = arith.maximumf %91, %136 : vector<4x256xf32>
    %c224_i32 = arith.constant 224 : i32
    %138 = tpu.dynamic_rotate %0 by %c224_i32 dim 1 : vector<1x256xf32>, i32 -> vector<1x256xf32>
    %139 = arith.subf %138, %0 : vector<1x256xf32>
    %140 = math.absf %139 : vector<1x256xf32>
    %cst_48 = arith.constant 2.000000e+00 : f32
    %141 = vector.broadcast %cst_48 : f32 to vector<1x256xf32>
    %142 = arith.cmpf oeq, %140, %141 : vector<1x256xf32>
    %c224_i32_49 = arith.constant 224 : i32
    %143 = tpu.dynamic_rotate %137 by %c224_i32_49 dim 1 : vector<4x256xf32>, i32 -> vector<4x256xf32>
    %cst_50 = arith.constant 0xFF800000 : f32
    %144 = vector.shape_cast %142 : vector<1x256xi1> to vector<1x256xi1>
    %145 = vector.broadcast %144 : vector<1x256xi1> to vector<4x256xi1>
    %146 = vector.broadcast %cst_50 : f32 to vector<4x256xf32>
    %147 = arith.select %145, %143, %146 : vector<4x256xi1>, vector<4x256xf32>
    %148 = arith.maximumf %137, %147 : vector<4x256xf32>
    %c240_i32_51 = arith.constant 240 : i32
    %149 = tpu.dynamic_rotate %148 by %c240_i32_51 dim 1 : vector<4x256xf32>, i32 -> vector<4x256xf32>
    %cst_52 = arith.constant 0xFF800000 : f32
    %150 = vector.shape_cast %97 : vector<1x256xi1> to vector<1x256xi1>
    %151 = vector.broadcast %150 : vector<1x256xi1> to vector<4x256xi1>
    %152 = vector.broadcast %cst_52 : f32 to vector<4x256xf32>
    %153 = arith.select %151, %149, %152 : vector<4x256xi1>, vector<4x256xf32>
    %154 = arith.maximumf %148, %153 : vector<4x256xf32>
    %c16_i32_53 = arith.constant 16 : i32
    %155 = tpu.dynamic_rotate %91 by %c16_i32_53 dim 1 : vector<4x256xf32>, i32 -> vector<4x256xf32>
    %cst_54 = arith.constant 0xFF800000 : f32
    %156 = vector.shape_cast %114 : vector<1x256xi1> to vector<1x256xi1>
    %157 = vector.broadcast %156 : vector<1x256xi1> to vector<4x256xi1>
    %158 = vector.broadcast %cst_54 : f32 to vector<4x256xf32>
    %159 = arith.select %157, %155, %158 : vector<4x256xi1>, vector<4x256xf32>
    %160 = arith.maximumf %91, %159 : vector<4x256xf32>
    %c32_i32 = arith.constant 32 : i32
    %161 = tpu.dynamic_rotate %0 by %c32_i32 dim 1 : vector<1x256xf32>, i32 -> vector<1x256xf32>
    %162 = arith.subf %161, %0 : vector<1x256xf32>
    %163 = math.absf %162 : vector<1x256xf32>
    %cst_55 = arith.constant 2.000000e+00 : f32
    %164 = vector.broadcast %cst_55 : f32 to vector<1x256xf32>
    %165 = arith.cmpf oeq, %163, %164 : vector<1x256xf32>
    %c32_i32_56 = arith.constant 32 : i32
    %166 = tpu.dynamic_rotate %160 by %c32_i32_56 dim 1 : vector<4x256xf32>, i32 -> vector<4x256xf32>
    %cst_57 = arith.constant 0xFF800000 : f32
    %167 = vector.shape_cast %165 : vector<1x256xi1> to vector<1x256xi1>
    %168 = vector.broadcast %167 : vector<1x256xi1> to vector<4x256xi1>
    %169 = vector.broadcast %cst_57 : f32 to vector<4x256xf32>
    %170 = arith.select %168, %166, %169 : vector<4x256xi1>, vector<4x256xf32>
    %171 = arith.maximumf %160, %170 : vector<4x256xf32>
    %c16_i32_58 = arith.constant 16 : i32
    %172 = tpu.dynamic_rotate %171 by %c16_i32_58 dim 1 : vector<4x256xf32>, i32 -> vector<4x256xf32>
    %cst_59 = arith.constant 0xFF800000 : f32
    %173 = vector.shape_cast %114 : vector<1x256xi1> to vector<1x256xi1>
    %174 = vector.broadcast %173 : vector<1x256xi1> to vector<4x256xi1>
    %175 = vector.broadcast %cst_59 : f32 to vector<4x256xf32>
    %176 = arith.select %174, %172, %175 : vector<4x256xi1>, vector<4x256xf32>
    %177 = arith.maximumf %171, %176 : vector<4x256xf32>
    %178 = arith.maximumf %154, %177 : vector<4x256xf32>
    %c0_60 = arith.constant 0 : index
    %c8 = arith.constant 8 : index
    %179 = vector.load %arg5[%c0_60, %c8] : memref<8x16xbf16, #tpu.memory_space<vmem>>, vector<8x4xbf16>
    %180 = arith.truncf %178 : vector<4x256xf32> to vector<4x256xbf16>
    %cst_61 = arith.constant dense<0.000000e+00> : vector<8x256xf32>
    %181 = tpu.matmul %179, %180, %cst_61 {dimension_numbers = #tpu.dot_dimension_numbers<[1], [0], [0], [1], [0, 0, 1, 1], [], []>} : vector<8x4xbf16>, vector<4x256xbf16>, vector<8x256xf32> -> vector<8x256xf32>
    %182 = arith.addf %131, %181 : vector<8x256xf32>
    %c240_i32_62 = arith.constant 240 : i32
    %183 = tpu.dynamic_rotate %92 by %c240_i32_62 dim 1 : vector<4x256xf32>, i32 -> vector<4x256xf32>
    %cst_63 = arith.constant 0xFF800000 : f32
    %184 = vector.shape_cast %97 : vector<1x256xi1> to vector<1x256xi1>
    %185 = vector.broadcast %184 : vector<1x256xi1> to vector<4x256xi1>
    %186 = vector.broadcast %cst_63 : f32 to vector<4x256xf32>
    %187 = arith.select %185, %183, %186 : vector<4x256xi1>, vector<4x256xf32>
    %188 = arith.maximumf %92, %187 : vector<4x256xf32>
    %c224_i32_64 = arith.constant 224 : i32
    %189 = tpu.dynamic_rotate %188 by %c224_i32_64 dim 1 : vector<4x256xf32>, i32 -> vector<4x256xf32>
    %cst_65 = arith.constant 0xFF800000 : f32
    %190 = vector.shape_cast %142 : vector<1x256xi1> to vector<1x256xi1>
    %191 = vector.broadcast %190 : vector<1x256xi1> to vector<4x256xi1>
    %192 = vector.broadcast %cst_65 : f32 to vector<4x256xf32>
    %193 = arith.select %191, %189, %192 : vector<4x256xi1>, vector<4x256xf32>
    %194 = arith.maximumf %188, %193 : vector<4x256xf32>
    %c208_i32 = arith.constant 208 : i32
    %195 = tpu.dynamic_rotate %0 by %c208_i32 dim 1 : vector<1x256xf32>, i32 -> vector<1x256xf32>
    %196 = arith.subf %195, %0 : vector<1x256xf32>
    %197 = math.absf %196 : vector<1x256xf32>
    %cst_66 = arith.constant 3.000000e+00 : f32
    %198 = vector.broadcast %cst_66 : f32 to vector<1x256xf32>
    %199 = arith.cmpf oeq, %197, %198 : vector<1x256xf32>
    %c208_i32_67 = arith.constant 208 : i32
    %200 = tpu.dynamic_rotate %194 by %c208_i32_67 dim 1 : vector<4x256xf32>, i32 -> vector<4x256xf32>
    %cst_68 = arith.constant 0xFF800000 : f32
    %201 = vector.shape_cast %199 : vector<1x256xi1> to vector<1x256xi1>
    %202 = vector.broadcast %201 : vector<1x256xi1> to vector<4x256xi1>
    %203 = vector.broadcast %cst_68 : f32 to vector<4x256xf32>
    %204 = arith.select %202, %200, %203 : vector<4x256xi1>, vector<4x256xf32>
    %205 = arith.maximumf %194, %204 : vector<4x256xf32>
    %c16_i32_69 = arith.constant 16 : i32
    %206 = tpu.dynamic_rotate %92 by %c16_i32_69 dim 1 : vector<4x256xf32>, i32 -> vector<4x256xf32>
    %cst_70 = arith.constant 0xFF800000 : f32
    %207 = vector.shape_cast %114 : vector<1x256xi1> to vector<1x256xi1>
    %208 = vector.broadcast %207 : vector<1x256xi1> to vector<4x256xi1>
    %209 = vector.broadcast %cst_70 : f32 to vector<4x256xf32>
    %210 = arith.select %208, %206, %209 : vector<4x256xi1>, vector<4x256xf32>
    %211 = arith.maximumf %92, %210 : vector<4x256xf32>
    %c32_i32_71 = arith.constant 32 : i32
    %212 = tpu.dynamic_rotate %211 by %c32_i32_71 dim 1 : vector<4x256xf32>, i32 -> vector<4x256xf32>
    %cst_72 = arith.constant 0xFF800000 : f32
    %213 = vector.shape_cast %165 : vector<1x256xi1> to vector<1x256xi1>
    %214 = vector.broadcast %213 : vector<1x256xi1> to vector<4x256xi1>
    %215 = vector.broadcast %cst_72 : f32 to vector<4x256xf32>
    %216 = arith.select %214, %212, %215 : vector<4x256xi1>, vector<4x256xf32>
    %217 = arith.maximumf %211, %216 : vector<4x256xf32>
    %c48_i32 = arith.constant 48 : i32
    %218 = tpu.dynamic_rotate %0 by %c48_i32 dim 1 : vector<1x256xf32>, i32 -> vector<1x256xf32>
    %219 = arith.subf %218, %0 : vector<1x256xf32>
    %220 = math.absf %219 : vector<1x256xf32>
    %cst_73 = arith.constant 3.000000e+00 : f32
    %221 = vector.broadcast %cst_73 : f32 to vector<1x256xf32>
    %222 = arith.cmpf oeq, %220, %221 : vector<1x256xf32>
    %c48_i32_74 = arith.constant 48 : i32
    %223 = tpu.dynamic_rotate %217 by %c48_i32_74 dim 1 : vector<4x256xf32>, i32 -> vector<4x256xf32>
    %cst_75 = arith.constant 0xFF800000 : f32
    %224 = vector.shape_cast %222 : vector<1x256xi1> to vector<1x256xi1>
    %225 = vector.broadcast %224 : vector<1x256xi1> to vector<4x256xi1>
    %226 = vector.broadcast %cst_75 : f32 to vector<4x256xf32>
    %227 = arith.select %225, %223, %226 : vector<4x256xi1>, vector<4x256xf32>
    %228 = arith.maximumf %217, %227 : vector<4x256xf32>
    %229 = arith.maximumf %205, %228 : vector<4x256xf32>
    %c0_76 = arith.constant 0 : index
    %c12 = arith.constant 12 : index
    %230 = vector.load %arg5[%c0_76, %c12] : memref<8x16xbf16, #tpu.memory_space<vmem>>, vector<8x4xbf16>
    %231 = arith.truncf %229 : vector<4x256xf32> to vector<4x256xbf16>
    %cst_77 = arith.constant dense<0.000000e+00> : vector<8x256xf32>
    %232 = tpu.matmul %230, %231, %cst_77 {dimension_numbers = #tpu.dot_dimension_numbers<[1], [0], [0], [1], [0, 0, 1, 1], [], []>} : vector<8x4xbf16>, vector<4x256xbf16>, vector<8x256xf32> -> vector<8x256xf32>
    %233 = arith.addf %182, %232 : vector<8x256xf32>
    %cst_78 = arith.constant 1.000000e-01 : f32
    %234 = vector.broadcast %cst_78 : f32 to vector<8x256xf32>
    %235 = arith.mulf %234, %233 : vector<8x256xf32>
    %236 = arith.maximumf %233, %235 : vector<8x256xf32>
    %c0_79 = arith.constant 0 : index
    %c0_80 = arith.constant 0 : index
    %c0_81 = arith.constant 0 : index
    %237 = vector.load %arg7[%c0_79, %c0_80, %c0_81] : memref<1x8x256xf32, #tpu.memory_space<vmem>>, vector<1x8x256xf32>
    %238 = vector.shape_cast %237 : vector<1x8x256xf32> to vector<8x256xf32>
    %239 = vector.shape_cast %236 : vector<8x256xf32> to vector<1x8x256xf32>
    tpu.vector_store %arg7[%c0_79, %c0_80, %c0_81], %239 {strides = array<i32>} : memref<1x8x256xf32, #tpu.memory_space<vmem>>, vector<1x8x256xf32>,
    return
  }
  func.func @transform_0(%arg0: i32) -> (i32, i32, i32) {
    %c0_i32 = arith.constant 0 : i32
    %c0_i32_0 = arith.constant 0 : i32
    %c0_i32_1 = arith.constant 0 : i32
    return %arg0, %c0_i32, %c0_i32_0 : i32, i32, i32
  }
  func.func @transform_1(%arg0: i32) -> (i32, i32) {
    %c0_i32 = arith.constant 0 : i32
    %c0_i32_0 = arith.constant 0 : i32
    %c0_i32_1 = arith.constant 0 : i32
    return %c0_i32, %c0_i32_0 : i32, i32
  }
  func.func @transform_2(%arg0: i32) -> (i32, i32) {
    %c0_i32 = arith.constant 0 : i32
    %c0_i32_0 = arith.constant 0 : i32
    %c0_i32_1 = arith.constant 0 : i32
    return %c0_i32, %c0_i32_0 : i32, i32
  }
  func.func @transform_3(%arg0: i32) -> (i32, i32) {
    %c0_i32 = arith.constant 0 : i32
    %c0_i32_0 = arith.constant 0 : i32
    %c0_i32_1 = arith.constant 0 : i32
    return %c0_i32, %c0_i32_0 : i32, i32
  }
  func.func @transform_4(%arg0: i32) -> (i32, i32) {
    %c0_i32 = arith.constant 0 : i32
    %c0_i32_0 = arith.constant 0 : i32
    %c0_i32_1 = arith.constant 0 : i32
    return %c0_i32, %c0_i32_0 : i32, i32
  }
  func.func @transform_5(%arg0: i32) -> (i32, i32) {
    %c0_i32 = arith.constant 0 : i32
    %c0_i32_0 = arith.constant 0 : i32
    %c0_i32_1 = arith.constant 0 : i32
    return %c0_i32, %c0_i32_0 : i32, i32
  }
  func.func @transform_6(%arg0: i32) -> (i32, i32, i32) {
    %c0_i32 = arith.constant 0 : i32
    %c0_i32_0 = arith.constant 0 : i32
    %c0_i32_1 = arith.constant 0 : i32
    return %arg0, %c0_i32, %c0_i32_0 : i32, i32, i32
  }
}

</mosaic_0001>

<llo_original>
// kernel: spp_bottleneck.1
$region0: #{spp_bottleneck.1}
  #allocation0 [shape = 'u32[]', space=smem, size = 0x4, offset = 0x4, fixed_abs, tag = 'smem constant byte address 0x4 - core index']
  #allocation1 [shape = 'u32[144,128]{1,0:T(1,128)}', space=vmem, size = 0x12000, scoped, tag = 'internal scratch']
  %s0 = inlined_call_operand.vmem [shape: f32[2,8,256], index: 0, kind: input, shape index: {}]
  %s1 = inlined_call_operand.vmem [shape: f32[1,256], index: 1, kind: input, shape index: {}]
  %s2 = inlined_call_operand.vmem [shape: bf16[4,8], index: 2, kind: input, shape index: {}]
  %s3 = inlined_call_operand.vmem [shape: f32[4,1], index: 3, kind: input, shape index: {}]
  %s4 = inlined_call_operand.vmem [shape: bf16[8,16], index: 4, kind: input, shape index: {}]
  %s5 = inlined_call_operand.vmem [shape: f32[8,1], index: 5, kind: input, shape index: {}]
  %s6 = inlined_call_operand.vmem [shape: f32[2,8,256], index: 6, kind: output, shape index: {}]
  %s7 = sld [smem:[#allocation0]]
  $region57: #{spp_bottleneck.1} parent=0
    _
  %s9 = ssub.s32 1, %s7
  %s10 = scalar_select 0, %s9, %s7
  loop: start=0, step=1, limit=4
  $region2: #{spp_bottleneck.1} parent=0 // loop_pre_header
    _
  $region3: #{spp_bottleneck.1} parent=0 // loop_header
    %s12 = sphi 0, %s16
    %p13 = scmp.ge.s32.totalorder %s12, 4
    %s22 = sphi 0, %s24
    %s25 = sphi 0, %s22
    %s26 = sphi 0, %s25
    %s42 = sphi 0, %s26
    %s46 = sphi 0, %s46
    %s48 = sphi 0, %s46
    %s49 = sphi 0, %s48
    %s63 = sphi 0, %s49
    %s67 = sphi 0, %s67
    %s69 = sphi 0, %s67
    %s70 = sphi 0, %s69
    %s84 = sphi 0, %s70
    %s88 = sphi 0, %s88
    %s90 = sphi 0, %s88
    %s91 = sphi 0, %s90
    %s105 = sphi 0, %s91
    %s109 = sphi 0, %s109
    %s111 = sphi 0, %s109
    %s112 = sphi 0, %s111
    %s126 = sphi 0, %s112
    %s130 = sphi 0, %s130
    %s132 = sphi 0, %s130
    %s133 = sphi 0, %s132
    %s147 = sphi 0, %s133
    %s153 = sphi 0, %s155
    %s156 = sphi 0, %s153
    %s157 = sphi 0, %s156
    %s173 = sphi 0, %s157
  $region4: #{spp_bottleneck.1} parent=0 // loop_header_branch
    %15 = sbr.rel (%p13) target = $region8
  $region5: #{spp_bottleneck.1} parent=0 // loop_body
    %s17 = ssub.s32 %s12, 1
    %s18 = ssub.s32 %s12, 2
    %s19 = sadd.s32 %s12, 1
    %s20 = ssub.s32 %s12, %s19
    %p21 = scmp.eq.s32.totalorder %s20, 0
    %s23 = sadd.s32 %s22, 1
    %s24 = scalar_select %p21, %s22, %s23
    %p27 = pneg %p21
    %p28 = scmp.eq.s32.totalorder %s12, 1
    %p29 = por %p27, %p28
    %p30 = scmp.ne.s32.totalorder %s22, %s25
    %p31 = scmp.eq.s32.totalorder %s12, 0
    %p32 = por %p30, %p31
    %p33 = scmp.ne.s32.totalorder %s22, %s25
    %p34 = scmp.eq.s32.totalorder %s17, 1
    %p35 = por %p33, %p34
    %p36 = scmp.ne.s32.totalorder %s25, %s26
    %p37 = scmp.eq.s32.totalorder %s17, 0
    %p38 = por %p36, %p37
    %p39 = scmp.ne.s32.totalorder %s25, %s26
    %p40 = scmp.eq.s32.totalorder %s18, 1
    %p41 = por %p39, %p40
    %p43 = scmp.ne.s32.totalorder %s26, %s42
    %p44 = scmp.eq.s32.totalorder %s18, 0
    %p45 = por %p43, %p44
    %s47 = sadd.s32 %s46, 1
    %p50 = scmp.eq.s32.totalorder %s12, 1
    %p51 = scmp.ne.s32.totalorder %s46, %s48
    %p52 = scmp.eq.s32.totalorder %s12, 0
    %p53 = por %p51, %p52
    %p54 = scmp.ne.s32.totalorder %s46, %s48
    %p55 = scmp.eq.s32.totalorder %s17, 1
    %p56 = por %p54, %p55
    %p57 = scmp.ne.s32.totalorder %s48, %s49
    %p58 = scmp.eq.s32.totalorder %s17, 0
    %p59 = por %p57, %p58
    %p60 = scmp.ne.s32.totalorder %s48, %s49
    %p61 = scmp.eq.s32.totalorder %s18, 1
    %p62 = por %p60, %p61
    %p64 = scmp.ne.s32.totalorder %s49, %s63
    %p65 = scmp.eq.s32.totalorder %s18, 0
    %p66 = por %p64, %p65
    %s68 = sadd.s32 %s67, 1
    %p71 = scmp.eq.s32.totalorder %s12, 1
    %p72 = scmp.ne.s32.totalorder %s67, %s69
    %p73 = scmp.eq.s32.totalorder %s12, 0
    %p74 = por %p72, %p73
    %p75 = scmp.ne.s32.totalorder %s67, %s69
    %p76 = scmp.eq.s32.totalorder %s17, 1
    %p77 = por %p75, %p76
    %p78 = scmp.ne.s32.totalorder %s69, %s70
    %p79 = scmp.eq.s32.totalorder %s17, 0
    %p80 = por %p78, %p79
    %p81 = scmp.ne.s32.totalorder %s69, %s70
    %p82 = scmp.eq.s32.totalorder %s18, 1
    %p83 = por %p81, %p82
    %p85 = scmp.ne.s32.totalorder %s70, %s84
    %p86 = scmp.eq.s32.totalorder %s18, 0
    %p87 = por %p85, %p86
    %s89 = sadd.s32 %s88, 1
    %p92 = scmp.eq.s32.totalorder %s12, 1
    %p93 = scmp.ne.s32.totalorder %s88, %s90
    %p94 = scmp.eq.s32.totalorder %s12, 0
    %p95 = por %p93, %p94
    %p96 = scmp.ne.s32.totalorder %s88, %s90
    %p97 = scmp.eq.s32.totalorder %s17, 1
    %p98 = por %p96, %p97
    %p99 = scmp.ne.s32.totalorder %s90, %s91
    %p100 = scmp.eq.s32.totalorder %s17, 0
    %p101 = por %p99, %p100
    %p102 = scmp.ne.s32.totalorder %s90, %s91
    %p103 = scmp.eq.s32.totalorder %s18, 1
    %p104 = por %p102, %p103
    %p106 = scmp.ne.s32.totalorder %s91, %s105
    %p107 = scmp.eq.s32.totalorder %s18, 0
    %p108 = por %p106, %p107
    %s110 = sadd.s32 %s109, 1
    %p113 = scmp.eq.s32.totalorder %s12, 1
    %p114 = scmp.ne.s32.totalorder %s109, %s111
    %p115 = scmp.eq.s32.totalorder %s12, 0
    %p116 = por %p114, %p115
    %p117 = scmp.ne.s32.totalorder %s109, %s111
    %p118 = scmp.eq.s32.totalorder %s17, 1
    %p119 = por %p117, %p118
    %p120 = scmp.ne.s32.totalorder %s111, %s112
    %p121 = scmp.eq.s32.totalorder %s17, 0
    %p122 = por %p120, %p121
    %p123 = scmp.ne.s32.totalorder %s111, %s112
    %p124 = scmp.eq.s32.totalorder %s18, 1
    %p125 = por %p123, %p124
    %p127 = scmp.ne.s32.totalorder %s112, %s126
    %p128 = scmp.eq.s32.totalorder %s18, 0
    %p129 = por %p127, %p128
    %s131 = sadd.s32 %s130, 1
    %p134 = scmp.eq.s32.totalorder %s12, 1
    %p135 = scmp.ne.s32.totalorder %s130, %s132
    %p136 = scmp.eq.s32.totalorder %s12, 0
    %p137 = por %p135, %p136
    %p138 = scmp.ne.s32.totalorder %s130, %s132
    %p139 = scmp.eq.s32.totalorder %s17, 1
    %p140 = por %p138, %p139
    %p141 = scmp.ne.s32.totalorder %s132, %s133
    %p142 = scmp.eq.s32.totalorder %s17, 0
    %p143 = por %p141, %p142
    %p144 = scmp.ne.s32.totalorder %s132, %s133
    %p145 = scmp.eq.s32.totalorder %s18, 1
    %p146 = por %p144, %p145
    %p148 = scmp.ne.s32.totalorder %s133, %s147
    %p149 = scmp.eq.s32.totalorder %s18, 0
    %p150 = por %p148, %p149
    %s151 = ssub.s32 %s12, %s19
    %p152 = scmp.eq.s32.totalorder %s151, 0
    %s154 = sadd.s32 %s153, 1
    %s155 = scalar_select %p152, %s153, %s154
    %p158 = pneg %p152
    %p159 = scmp.eq.s32.totalorder %s12, 1
    %p160 = por %p158, %p159
    %p161 = scmp.ne.s32.totalorder %s153, %s156
    %p162 = scmp.eq.s32.totalorder %s12, 0
    %p163 = por %p161, %p162
    %p164 = scmp.ne.s32.totalorder %s153, %s156
    %p165 = scmp.eq.s32.totalorder %s17, 1
    %p166 = por %p164, %p165
    %p167 = scmp.ne.s32.totalorder %s156, %s157
    %p168 = scmp.eq.s32.totalorder %s17, 0
    %p169 = por %p167, %p168
    %p170 = scmp.ne.s32.totalorder %s156, %s157
    %p171 = scmp.eq.s32.totalorder %s18, 1
    %p172 = por %p170, %p171
    %p174 = scmp.ne.s32.totalorder %s157, %s173
    %p175 = scmp.eq.s32.totalorder %s18, 0
    %p176 = por %p174, %p175
    %p177 = scmp.le.s32.totalorder 1, %s12
    %p178 = scmp.lt.s32.totalorder %s12, 3
    %p179 = pnand %p177, %p178
    %p180 = pneg %p179
    // Predicated region
    $region9: #{spp_bottleneck.1} parent=5 // pred_check
      _
    $region10: #{spp_bottleneck.1} parent=5 // pred_check_branch
      %182 = sbr.rel (%p179) target = $region12
    $region11: #{spp_bottleneck.1} parent=5 // pred_region
      %s183 = ssub.s32 %s12, 1
      // Predicated region
      $region13: #{spp_bottleneck.1} parent=11 // pred_check
        %p184 = pneg %p59
      $region14: #{spp_bottleneck.1} parent=11 // pred_check_branch
        %186 = sbr.rel (%p184) target = $region16
      $region15: #{spp_bottleneck.1} parent=11 // pred_region
        _
      $region16: #{spp_bottleneck.1} parent=11 // pred_fallthru
        _
      // Predicated region
      $region17: #{spp_bottleneck.1} parent=11 // pred_check
        %p187 = pneg %p80
      $region18: #{spp_bottleneck.1} parent=11 // pred_check_branch
        %189 = sbr.rel (%p187) target = $region20
      $region19: #{spp_bottleneck.1} parent=11 // pred_region
        _
      $region20: #{spp_bottleneck.1} parent=11 // pred_fallthru
        _
      // Predicated region
      $region21: #{spp_bottleneck.1} parent=11 // pred_check
        %p190 = pneg %p101
      $region22: #{spp_bottleneck.1} parent=11 // pred_check_branch
        %192 = sbr.rel (%p190) target = $region24
      $region23: #{spp_bottleneck.1} parent=11 // pred_region
        _
      $region24: #{spp_bottleneck.1} parent=11 // pred_fallthru
        _
      // Predicated region
      $region25: #{spp_bottleneck.1} parent=11 // pred_check
        %p193 = pneg %p122
      $region26: #{spp_bottleneck.1} parent=11 // pred_check_branch
        %195 = sbr.rel (%p193) target = $region28
      $region27: #{spp_bottleneck.1} parent=11 // pred_region
        _
      $region28: #{spp_bottleneck.1} parent=11 // pred_fallthru
        _
      // Predicated region
      $region29: #{spp_bottleneck.1} parent=11 // pred_check
        %p196 = pneg %p143
      $region30: #{spp_bottleneck.1} parent=11 // pred_check_branch
        %198 = sbr.rel (%p196) target = $region32
      $region31: #{spp_bottleneck.1} parent=11 // pred_region
        _
      $region32: #{spp_bottleneck.1} parent=11 // pred_fallthru
        _
    $region12: #{spp_bottleneck.1} parent=5 // pred_fallthru
      _
    %p199 = scmp.lt.s32.totalorder %s12, 2
    // Predicated region
    $region33: #{spp_bottleneck.1} parent=5 // pred_check
      %p200 = pneg %p199
    $region34: #{spp_bottleneck.1} parent=5 // pred_check_branch
      %202 = sbr.rel (%p200) target = $region36
    $region35: #{spp_bottleneck.1} parent=5 // pred_region
      // Predicated region
      $region37: #{spp_bottleneck.1} parent=35 // pred_check
        %p203 = pneg %p32
      $region38: #{spp_bottleneck.1} parent=35 // pred_check_branch
        %205 = sbr.rel (%p203) target = $region40
      $region39: #{spp_bottleneck.1} parent=35 // pred_region
        %p206 = scmp.lt.s32.totalorder %s12, 1
        %s207 = scalar_select %p206, %s12, 1
        %s208 = smul.addr %s207, 2
        %s209 = smul.addr %s208, 8
        %s210 = scalar_lea.vmem %s0, %s209
      $region40: #{spp_bottleneck.1} parent=35 // pred_fallthru
        _
    $region36: #{spp_bottleneck.1} parent=5 // pred_fallthru
      _
    %p211 = scmp.le.s32.totalorder 1, %s12
    %p212 = scmp.lt.s32.totalorder %s12, 3
    %p213 = pnand %p211, %p212
    %p214 = pneg %p213
    // Predicated region
    $region41: #{spp_bottleneck.1} parent=5 // pred_check
      _
    $region42: #{spp_bottleneck.1} parent=5 // pred_check_branch
      %216 = sbr.rel (%p213) target = $region44
    $region43: #{spp_bottleneck.1} parent=5 // pred_region
      %s217 = ssub.s32 %s12, 1
      %p218 = scmp.lt.s32.totalorder %s17, 1
      %s219 = scalar_select %p218, %s17, 1
      %s220 = smul.addr %s219, 2
      %s221 = smul.addr %s220, 8
      %s222 = scalar_lea.vmem %s0, %s221
      %p223 = pneg %p38
      %p224 = pneg %p35
      %p225 = pneg %p59
      %p226 = pneg %p56
      %p227 = pneg %p80
      %p228 = pneg %p77
      %p229 = pneg %p101
      %p230 = pneg %p98
      %p231 = pneg %p122
      %p232 = pneg %p119
      %p233 = pneg %p143
      %p234 = pneg %p140
      %p235 = pneg %p169
      %p236 = pneg %p166
      %p237 = scmp.lt.s32.totalorder %s17, 1
      %s238 = scalar_select %p237, %s17, 1
      %s239 = smul.addr %s238, 2
      %s240 = smul.addr %s239, 8
      %s241 = scalar_lea.vmem %s6, %s240
      %p242 = scmp.lt.s32.totalorder %s17, 1
      %s243 = scalar_select %p242, %s17, 1
      %s244 = smul.addr %s243, 2
      %s245 = smul.addr %s244, 8
      %s246 = scalar_lea.vmem %s0, %s245
      %p247 = scmp.lt.s32.totalorder %s17, 1
      %s248 = scalar_select %p247, %s17, 1
      %s249 = smul.addr %s248, 2
      %s250 = smul.addr %s249, 8
      %s251 = scalar_lea.vmem %s6, %s250
      %v253 = vld [vmem:[%s1] sm:$0x3]
      %v254 = vld [vmem:[%s246] sm:$0xff]
      %v255 = vld [vmem:[%s246 + $0x8] sm:$0xff]
      %v256 = vpack.c.bf16 %v254, %v254
      %v257 = vpack.c.bf16 %v255, %v255
      %v258 = vld [vmem:[%s2] sm:$0x3]
      %v259 = vld [vmem:[%s3] sm:$0xf]
      %261 = vset.pattern.permute.xlu0 0
      %262 = vperm.xlu0 %261, %v259
      %v263 = vpop.permute.xlu0 %262
      %vm265 = vcmask 64512
      %v267 = vsel %vm265, %v258, 0
      %vm269 = vcmask 1043456
      %v271 = vsel %vm269, %v256, 0
      %v274 = vsel %vm269, %v257, 0
      %276 = vmatprep.subr.bf16.mxu0 %v274
      %277 = vmatpush1.bf16.msra.mxu0 %v271
      %278 = vmatprep.subr.bf16.mxu0 0
      %279 = vmatpush1.bf16.msra.mxu0 0
      %280 = vmatprep.subr.bf16.mxu0 0
      %281 = vmatpush1.bf16.msra.mxu0 0
      %282 = vmatprep.subr.bf16.mxu0 0
      %283 = vmatpush1.bf16.msra.mxu0 0
      %284 = vmatprep.subr.bf16.mxu0 0
      %285 = vmatpush1.bf16.msra.mxu0 0
      %286 = vmatprep.subr.bf16.mxu0 0
      %287 = vmatpush1.bf16.msra.mxu0 0
      %288 = vmatprep.subr.bf16.mxu0 0
      %289 = vmatpush1.bf16.msra.mxu0 0
      %290 = vmatprep.subr.bf16.mxu0 0
      %291 = vmatpush1.bf16.msra.mxu0 0
      %292 = vmatprep.subr.bf16.mxu0 0
      %293 = vmatpush1.bf16.msra.mxu0 0
      %294 = vmatprep.subr.bf16.mxu0 0
      %295 = vmatpush1.bf16.msra.mxu0 0
      %296 = vmatprep.subr.bf16.mxu0 0
      %297 = vmatpush1.bf16.msra.mxu0 0
      %298 = vmatprep.subr.bf16.mxu0 0
      %299 = vmatpush1.bf16.msra.mxu0 0
      %300 = vmatprep.subr.bf16.mxu0 0
      %301 = vmatpush1.bf16.msra.mxu0 0
      %302 = vmatprep.subr.bf16.mxu0 0
      %303 = vmatpush1.bf16.msra.mxu0 0
      %304 = vmatprep.subr.bf16.mxu0 0
      %305 = vmatpush1.bf16.msra.mxu0 0
      %306 = vmatprep.subr.bf16.mxu0 0
      %307 = vmatpush1.bf16.msra.mxu0 0
      %308 = vmatprep.mubr.bf16.mxu0 0
      %309 = vmatmul.mubr.bf16.gmra.mrb[0].mxu0 %v267
      %v310 = vpop.f32.mrb[0].mxu0
      %v311 = vadd.f32 %v263, %v310
      %v312 = vpop.f32.mrb[0].mxu0
      %v313 = vadd.f32 %v263, %v312
      %v314 = vpop.f32.mrb[0].mxu0
      %v315 = vpop.f32.mrb[0].mxu0
      %316 = vdwg.mxu0
      %v317 = vmul.f32 %v311, 0.1
      %v318 = vmul.f32 %v313, 0.1
      %v319 = vmax.f32 %v311, %v317
      %v320 = vmax.f32 %v313, %v318
      %v321 = vld [vmem:[%s4] sm:$0xf]
      %v322 = vpack.c.bf16 %v319, %v319
      %v323 = vpack.c.bf16 %v320, %v320
      %v324 = vld [vmem:[%s5] sm:$0xff]
      %326 = vset.pattern.permute.xlu0 0
      %327 = vperm.xlu0 %326, %v324
      %v328 = vpop.permute.xlu0 %327
      %vm330 = vcmask 31744
      %v332 = vsel %vm330, %v321, 0
      %vm334 = vcmask 1041408
      %v336 = vsel %vm334, %v322, 0
      %v339 = vsel %vm334, %v323, 0
      %341 = vmatprep.subr.bf16.mxu0 %v339
      %342 = vmatpush1.bf16.msra.mxu0 %v336
      %343 = vmatprep.subr.bf16.mxu0 0
      %344 = vmatpush1.bf16.msra.mxu0 0
      %345 = vmatprep.subr.bf16.mxu0 0
      %346 = vmatpush1.bf16.msra.mxu0 0
      %347 = vmatprep.subr.bf16.mxu0 0
      %348 = vmatpush1.bf16.msra.mxu0 0
      %349 = vmatprep.subr.bf16.mxu0 0
      %350 = vmatpush1.bf16.msra.mxu0 0
      %351 = vmatprep.subr.bf16.mxu0 0
      %352 = vmatpush1.bf16.msra.mxu0 0
      %353 = vmatprep.subr.bf16.mxu0 0
      %354 = vmatpush1.bf16.msra.mxu0 0
      %355 = vmatprep.subr.bf16.mxu0 0
      %356 = vmatpush1.bf16.msra.mxu0 0
      %357 = vmatprep.subr.bf16.mxu0 0
      %358 = vmatpush1.bf16.msra.mxu0 0
      %359 = vmatprep.subr.bf16.mxu0 0
      %360 = vmatpush1.bf16.msra.mxu0 0
      %361 = vmatprep.subr.bf16.mxu0 0
      %362 = vmatpush1.bf16.msra.mxu0 0
      %363 = vmatprep.subr.bf16.mxu0 0
      %364 = vmatpush1.bf16.msra.mxu0 0
      %365 = vmatprep.subr.bf16.mxu0 0
      %366 = vmatpush1.bf16.msra.mxu0 0
      %367 = vmatprep.subr.bf16.mxu0 0
      %368 = vmatpush1.bf16.msra.mxu0 0
      %369 = vmatprep.subr.bf16.mxu0 0
      %370 = vmatpush1.bf16.msra.mxu0 0
      %371 = vmatprep.subr.bf16.mxu0 0
      %372 = vmatpush1.bf16.msra.mxu0 0
      %373 = vmatprep.mubr.bf16.mxu0 0
      %374 = vmatmul.mubr.bf16.gmra.mrb[0].mxu0 %v332
      %v375 = vpop.f32.mrb[0].mxu0
      %v376 = vadd.f32 %v328, %v375
      %v377 = vpop.f32.mrb[0].mxu0
      %v378 = vadd.f32 %v328, %v377
      %v379 = vpop.f32.mrb[0].mxu0
      %v380 = vpop.f32.mrb[0].mxu0
      %381 = vdwg.mxu0
      %v383 = vlaneseq
      %v384 = vshrl.u32 %v383, 7
      %v385 = vsub.s32 0, %v384
      %v386 = vrot.slane %v253, %v385
      %v387 = vlaneseq
      %v388 = vshrl.u32 %v387, 7
      %v389 = vsub.s32 1, %v388
      %v390 = vrot.slane %v253, %v389
      %393 = vrot.lane.b32.xlu0 %v386, 127
      %v394 = vpop.permute.xlu0 %393
      %395 = vrot.lane.b32.xlu0 %v390, 127
      %v396 = vpop.permute.xlu0 %395
      %v397 = vlaneseq
      %v398 = vand.u32 %v397, 127
      %vm399 = vcmp.lt.s32.totalorder %v398, 127
      %v400 = vsel %vm399, %v394, %v396
      %v401 = vsel %vm399, %v396, %v394
      %vm402 = vcmp.eq.f32.partialorder %v400, %v386
      %vm403 = vcmp.eq.f32.partialorder %v401, %v390
      %404 = vrot.lane.b32.xlu0 %v319, 127
      %v405 = vpop.permute.xlu0 %404
      %406 = vrot.lane.b32.xlu0 %v320, 127
      %v407 = vpop.permute.xlu0 %406
      %v408 = vsel %vm399, %v405, %v407
      %v409 = vsel %vm399, %v407, %v405
      %v410 = vsel %vm402, 1, 0
      %v411 = vsel %vm403, 1, 0
      %v412 = vlaneseq
      %v413 = vshrl.u32 %v412, 7
      %v414 = vsub.s32 0, %v413
      %v415 = vrot.slane %v410, %v414
      %v416 = vlaneseq
      %v417 = vshrl.u32 %v416, 7
      %v418 = vsub.s32 0, %v417
      %v419 = vrot.slane %v411, %v418
      %vm420 = vcmp.eq.s32.totalorder %v415, 1
      %vm421 = vcmp.eq.s32.totalorder %v419, 1
      %v422 = vsel %vm420, %v408, -inf
      %v423 = vsel %vm421, %v409, -inf
      %v424 = vmax.f32 %v319, %v422
      %v425 = vmax.f32 %v320, %v423
      %426 = vrot.lane.b32.xlu0 %v386, 126
      %v427 = vpop.permute.xlu0 %426
      %428 = vrot.lane.b32.xlu0 %v390, 126
      %v429 = vpop.permute.xlu0 %428
      %vm430 = vcmp.lt.s32.totalorder %v398, 126
      %v431 = vsel %vm430, %v427, %v429
      %v432 = vsel %vm430, %v429, %v427
      %vm433 = vcmp.eq.f32.partialorder %v431, %v386
      %vm434 = vcmp.eq.f32.partialorder %v432, %v390
      %435 = vrot.lane.b32.xlu0 %v424, 126
      %v436 = vpop.permute.xlu0 %435
      %437 = vrot.lane.b32.xlu0 %v425, 126
      %v438 = vpop.permute.xlu0 %437
      %v439 = vsel %vm430, %v436, %v438
      %v440 = vsel %vm430, %v438, %v436
      %v441 = vsel %vm433, 1, 0
      %v442 = vsel %vm434, 1, 0
      %v443 = vlaneseq
      %v444 = vshrl.u32 %v443, 7
      %v445 = vsub.s32 0, %v444
      %v446 = vrot.slane %v441, %v445
      %v447 = vlaneseq
      %v448 = vshrl.u32 %v447, 7
      %v449 = vsub.s32 0, %v448
      %v450 = vrot.slane %v442, %v449
      %vm451 = vcmp.eq.s32.totalorder %v446, 1
      %vm452 = vcmp.eq.s32.totalorder %v450, 1
      %v453 = vsel %vm451, %v439, -inf
      %v454 = vsel %vm452, %v440, -inf
      %v455 = vmax.f32 %v424, %v453
      %v456 = vmax.f32 %v425, %v454
      %457 = vrot.lane.b32.xlu0 %v424, 127
      %v458 = vpop.permute.xlu0 %457
      %459 = vrot.lane.b32.xlu0 %v425, 127
      %v460 = vpop.permute.xlu0 %459
      %v461 = vsel %vm399, %v458, %v460
      %v462 = vsel %vm399, %v460, %v458
      %v463 = vsel %vm420, %v461, -inf
      %v464 = vsel %vm421, %v462, -inf
      %v465 = vmax.f32 %v424, %v463
      %v466 = vmax.f32 %v425, %v464
      %467 = vrot.lane.b32.xlu0 %v455, 127
      %v468 = vpop.permute.xlu0 %467
      %469 = vrot.lane.b32.xlu0 %v456, 127
      %v470 = vpop.permute.xlu0 %469
      %v471 = vsel %vm399, %v468, %v470
      %v472 = vsel %vm399, %v470, %v468
      %v473 = vsel %vm420, %v471, -inf
      %v474 = vsel %vm421, %v472, -inf
      %v475 = vmax.f32 %v455, %v473
      %v476 = vmax.f32 %v456, %v474
      %477 = vrot.lane.b32.xlu0 %v386, 125
      %v478 = vpop.permute.xlu0 %477
      %479 = vrot.lane.b32.xlu0 %v390, 125
      %v480 = vpop.permute.xlu0 %479
      %vm481 = vcmp.lt.s32.totalorder %v398, 125
      %v482 = vsel %vm481, %v478, %v480
      %v483 = vsel %vm481, %v480, %v478
      %vm484 = vcmp.eq.f32.partialorder %v482, %v386
      %vm485 = vcmp.eq.f32.partialorder %v483, %v390
      %486 = vrot.lane.b32.xlu0 %v455, 125
      %v487 = vpop.permute.xlu0 %486
      %488 = vrot.lane.b32.xlu0 %v456, 125
      %v489 = vpop.permute.xlu0 %488
      %v490 = vsel %vm481, %v487, %v489
      %v491 = vsel %vm481, %v489, %v487
      %v492 = vsel %vm484, 1, 0
      %v493 = vsel %vm485, 1, 0
      %v494 = vlaneseq
      %v495 = vshrl.u32 %v494, 7
      %v496 = vsub.s32 0, %v495
      %v497 = vrot.slane %v492, %v496
      %v498 = vlaneseq
      %v499 = vshrl.u32 %v498, 7
      %v500 = vsub.s32 0, %v499
      %v501 = vrot.slane %v493, %v500
      %vm502 = vcmp.eq.s32.totalorder %v497, 1
      %vm503 = vcmp.eq.s32.totalorder %v501, 1
      %v504 = vsel %vm502, %v490, -inf
      %v505 = vsel %vm503, %v491, -inf
      %v506 = vmax.f32 %v455, %v504
      %v507 = vmax.f32 %v456, %v505
      %508 = vrot.lane.b32.xlu0 %v386, 1
      %v509 = vpop.permute.xlu0 %508
      %510 = vrot.lane.b32.xlu0 %v390, 1
      %v511 = vpop.permute.xlu0 %510
      %vm512 = vcmp.lt.s32.totalorder %v398, 1
      %v513 = vsel %vm512, %v509, %v511
      %v514 = vsel %vm512, %v511, %v509
      %vm515 = vcmp.eq.f32.partialorder %v514, %v386
      %vm516 = vcmp.eq.f32.partialorder %v513, %v390
      %517 = vrot.lane.b32.xlu0 %v319, 1
      %v518 = vpop.permute.xlu0 %517
      %519 = vrot.lane.b32.xlu0 %v320, 1
      %v520 = vpop.permute.xlu0 %519
      %v521 = vsel %vm512, %v518, %v520
      %v522 = vsel %vm512, %v520, %v518
      %v523 = vsel %vm515, 1, 0
      %v524 = vsel %vm516, 1, 0
      %v525 = vlaneseq
      %v526 = vshrl.u32 %v525, 7
      %v527 = vsub.s32 0, %v526
      %v528 = vrot.slane %v523, %v527
      %v529 = vlaneseq
      %v530 = vshrl.u32 %v529, 7
      %v531 = vsub.s32 0, %v530
      %v532 = vrot.slane %v524, %v531
      %vm533 = vcmp.eq.s32.totalorder %v528, 1
      %vm534 = vcmp.eq.s32.totalorder %v532, 1
      %v535 = vsel %vm533, %v522, -inf
      %v536 = vsel %vm534, %v521, -inf
      %v537 = vmax.f32 %v319, %v535
      %v538 = vmax.f32 %v320, %v536
      %539 = vrot.lane.b32.xlu0 %v386, 2
      %v540 = vpop.permute.xlu0 %539
      %541 = vrot.lane.b32.xlu0 %v390, 2
      %v542 = vpop.permute.xlu0 %541
      %vm543 = vcmp.lt.s32.totalorder %v398, 2
      %v544 = vsel %vm543, %v540, %v542
      %v545 = vsel %vm543, %v542, %v540
      %vm546 = vcmp.eq.f32.partialorder %v545, %v386
      %vm547 = vcmp.eq.f32.partialorder %v544, %v390
      %548 = vrot.lane.b32.xlu0 %v537, 2
      %v549 = vpop.permute.xlu0 %548
      %550 = vrot.lane.b32.xlu0 %v538, 2
      %v551 = vpop.permute.xlu0 %550
      %v552 = vsel %vm543, %v549, %v551
      %v553 = vsel %vm543, %v551, %v549
      %v554 = vsel %vm546, 1, 0
      %v555 = vsel %vm547, 1, 0
      %v556 = vlaneseq
      %v557 = vshrl.u32 %v556, 7
      %v558 = vsub.s32 0, %v557
      %v559 = vrot.slane %v554, %v558
      %v560 = vlaneseq
      %v561 = vshrl.u32 %v560, 7
      %v562 = vsub.s32 0, %v561
      %v563 = vrot.slane %v555, %v562
      %vm564 = vcmp.eq.s32.totalorder %v559, 1
      %vm565 = vcmp.eq.s32.totalorder %v563, 1
      %v566 = vsel %vm564, %v553, -inf
      %v567 = vsel %vm565, %v552, -inf
      %v568 = vmax.f32 %v537, %v566
      %v569 = vmax.f32 %v538, %v567
      %570 = vrot.lane.b32.xlu0 %v537, 1
      %v571 = vpop.permute.xlu0 %570
      %572 = vrot.lane.b32.xlu0 %v538, 1
      %v573 = vpop.permute.xlu0 %572
      %v574 = vsel %vm512, %v571, %v573
      %v575 = vsel %vm512, %v573, %v571
      %v576 = vsel %vm533, %v575, -inf
      %v577 = vsel %vm534, %v574, -inf
      %v578 = vmax.f32 %v537, %v576
      %v579 = vmax.f32 %v538, %v577
      %580 = vrot.lane.b32.xlu0 %v568, 1
      %v581 = vpop.permute.xlu0 %580
      %582 = vrot.lane.b32.xlu0 %v569, 1
      %v583 = vpop.permute.xlu0 %582
      %v584 = vsel %vm512, %v581, %v583
      %v585 = vsel %vm512, %v583, %v581
      %v586 = vsel %vm533, %v585, -inf
      %v587 = vsel %vm534, %v584, -inf
      %v588 = vmax.f32 %v568, %v586
      %v589 = vmax.f32 %v569, %v587
      %590 = vrot.lane.b32.xlu0 %v386, 3
      %v591 = vpop.permute.xlu0 %590
      %592 = vrot.lane.b32.xlu0 %v390, 3
      %v593 = vpop.permute.xlu0 %592
      %vm594 = vcmp.lt.s32.totalorder %v398, 3
      %v595 = vsel %vm594, %v591, %v593
      %v596 = vsel %vm594, %v593, %v591
      %vm597 = vcmp.eq.f32.partialorder %v596, %v386
      %vm598 = vcmp.eq.f32.partialorder %v595, %v390
      %599 = vrot.lane.b32.xlu0 %v568, 3
      %v600 = vpop.permute.xlu0 %599
      %601 = vrot.lane.b32.xlu0 %v569, 3
      %v602 = vpop.permute.xlu0 %601
      %v603 = vsel %vm594, %v600, %v602
      %v604 = vsel %vm594, %v602, %v600
      %v605 = vsel %vm597, 1, 0
      %v606 = vsel %vm598, 1, 0
      %v607 = vlaneseq
      %v608 = vshrl.u32 %v607, 7
      %v609 = vsub.s32 0, %v608
      %v610 = vrot.slane %v605, %v609
      %v611 = vlaneseq
      %v612 = vshrl.u32 %v611, 7
      %v613 = vsub.s32 0, %v612
      %v614 = vrot.slane %v606, %v613
      %vm615 = vcmp.eq.s32.totalorder %v610, 1
      %vm616 = vcmp.eq.s32.totalorder %v614, 1
      %v617 = vsel %vm615, %v604, -inf
      %v618 = vsel %vm616, %v603, -inf
      %v619 = vmax.f32 %v568, %v617
      %v620 = vmax.f32 %v569, %v618
      %v621 = vmax.f32 %v465, %v578
      %v622 = vmax.f32 %v466, %v579
      %v623 = vmax.f32 %v475, %v588
      %v624 = vmax.f32 %v476, %v589
      %v625 = vmax.f32 %v506, %v619
      %v626 = vmax.f32 %v507, %v620
      %627 = vrot.lane.b32.xlu0 %v386, 112
      %v628 = vpop.permute.xlu0 %627
      %629 = vrot.lane.b32.xlu0 %v390, 112
      %v630 = vpop.permute.xlu0 %629
      %vm631 = vcmp.lt.s32.totalorder %v398, 112
      %v632 = vsel %vm631, %v628, %v630
      %v633 = vsel %vm631, %v630, %v628
      %v634 = vsub.f32 %v632, %v386
      %v635 = vsub.f32 %v633, %v390
      %v636 = vand.u32 2147483647, %v634
      %v637 = vand.u32 2147483647, %v635
      %vm638 = vcmp.eq.f32.partialorder %v636, 1.0
      %vm639 = vcmp.eq.f32.partialorder %v637, 1.0
      %640 = vrot.lane.b32.xlu0 %v621, 112
      %v641 = vpop.permute.xlu0 %640
      %642 = vrot.lane.b32.xlu0 %v622, 112
      %v643 = vpop.permute.xlu0 %642
      %v644 = vsel %vm631, %v641, %v643
      %v645 = vsel %vm631, %v643, %v641
      %v646 = vsel %vm638, 1, 0
      %v647 = vsel %vm639, 1, 0
      %v648 = vlaneseq
      %v649 = vshrl.u32 %v648, 7
      %v650 = vsub.s32 0, %v649
      %v651 = vrot.slane %v646, %v650
      %v652 = vlaneseq
      %v653 = vshrl.u32 %v652, 7
      %v654 = vsub.s32 0, %v653
      %v655 = vrot.slane %v647, %v654
      %vm656 = vcmp.eq.s32.totalorder %v651, 1
      %vm657 = vcmp.eq.s32.totalorder %v655, 1
      %v658 = vsel %vm656, %v644, -inf
      %v659 = vsel %vm657, %v645, -inf
      %v660 = vmax.f32 %v621, %v658
      %v661 = vmax.f32 %v622, %v659
      %662 = vrot.lane.b32.xlu0 %v660, 112
      %v663 = vpop.permute.xlu0 %662
      %664 = vrot.lane.b32.xlu0 %v661, 112
      %v665 = vpop.permute.xlu0 %664
      %v666 = vsel %vm631, %v663, %v665
      %v667 = vsel %vm631, %v665, %v663
      %v668 = vsel %vm656, %v666, -inf
      %v669 = vsel %vm657, %v667, -inf
      %v670 = vmax.f32 %v660, %v668
      %v671 = vmax.f32 %v661, %v669
      %672 = vrot.lane.b32.xlu0 %v386, 16
      %v673 = vpop.permute.xlu0 %672
      %674 = vrot.lane.b32.xlu0 %v390, 16
      %v675 = vpop.permute.xlu0 %674
      %vm676 = vcmp.lt.s32.totalorder %v398, 16
      %v677 = vsel %vm676, %v673, %v675
      %v678 = vsel %vm676, %v675, %v673
      %v679 = vsub.f32 %v678, %v386
      %v680 = vsub.f32 %v677, %v390
      %v681 = vand.u32 2147483647, %v679
      %v682 = vand.u32 2147483647, %v680
      %vm683 = vcmp.eq.f32.partialorder %v681, 1.0
      %vm684 = vcmp.eq.f32.partialorder %v682, 1.0
      %685 = vrot.lane.b32.xlu0 %v621, 16
      %v686 = vpop.permute.xlu0 %685
      %687 = vrot.lane.b32.xlu0 %v622, 16
      %v688 = vpop.permute.xlu0 %687
      %v689 = vsel %vm676, %v686, %v688
      %v690 = vsel %vm676, %v688, %v686
      %v691 = vsel %vm683, 1, 0
      %v692 = vsel %vm684, 1, 0
      %v693 = vlaneseq
      %v694 = vshrl.u32 %v693, 7
      %v695 = vsub.s32 0, %v694
      %v696 = vrot.slane %v691, %v695
      %v697 = vlaneseq
      %v698 = vshrl.u32 %v697, 7
      %v699 = vsub.s32 0, %v698
      %v700 = vrot.slane %v692, %v699
      %vm701 = vcmp.eq.s32.totalorder %v696, 1
      %vm702 = vcmp.eq.s32.totalorder %v700, 1
      %v703 = vsel %vm701, %v690, -inf
      %v704 = vsel %vm702, %v689, -inf
      %v705 = vmax.f32 %v621, %v703
      %v706 = vmax.f32 %v622, %v704
      %707 = vrot.lane.b32.xlu0 %v705, 16
      %v708 = vpop.permute.xlu0 %707
      %709 = vrot.lane.b32.xlu0 %v706, 16
      %v710 = vpop.permute.xlu0 %709
      %v711 = vsel %vm676, %v708, %v710
      %v712 = vsel %vm676, %v710, %v708
      %v713 = vsel %vm701, %v712, -inf
      %v714 = vsel %vm702, %v711, -inf
      %v715 = vmax.f32 %v705, %v713
      %v716 = vmax.f32 %v706, %v714
      %v717 = vmax.f32 %v670, %v715
      %v718 = vmax.f32 %v671, %v716
      %v719 = vpack.c.bf16 %v717, %v717
      %v720 = vpack.c.bf16 %v718, %v718
      %v722 = vunpack.c.l.b16 %v321
      %v723 = vpack.c.b16 %v722, %v722
      %724 = vrot.lane.b32.xlu0 %v723, 124
      %v725 = vpop.permute.xlu0 %724
      %v727 = vsel %vm330, %v725, 0
      %v730 = vsel %vm334, %v719, 0
      %v733 = vsel %vm334, %v720, 0
      %735 = vmatprep.subr.bf16.mxu0 %v733
      %736 = vmatpush1.bf16.msra.mxu0 %v730
      %737 = vmatprep.subr.bf16.mxu0 0
      %738 = vmatpush1.bf16.msra.mxu0 0
      %739 = vmatprep.subr.bf16.mxu0 0
      %740 = vmatpush1.bf16.msra.mxu0 0
      %741 = vmatprep.subr.bf16.mxu0 0
      %742 = vmatpush1.bf16.msra.mxu0 0
      %743 = vmatprep.subr.bf16.mxu0 0
      %744 = vmatpush1.bf16.msra.mxu0 0
      %745 = vmatprep.subr.bf16.mxu0 0
      %746 = vmatpush1.bf16.msra.mxu0 0
      %747 = vmatprep.subr.bf16.mxu0 0
      %748 = vmatpush1.bf16.msra.mxu0 0
      %749 = vmatprep.subr.bf16.mxu0 0
      %750 = vmatpush1.bf16.msra.mxu0 0
      %751 = vmatprep.subr.bf16.mxu0 0
      %752 = vmatpush1.bf16.msra.mxu0 0
      %753 = vmatprep.subr.bf16.mxu0 0
      %754 = vmatpush1.bf16.msra.mxu0 0
      %755 = vmatprep.subr.bf16.mxu0 0
      %756 = vmatpush1.bf16.msra.mxu0 0
      %757 = vmatprep.subr.bf16.mxu0 0
      %758 = vmatpush1.bf16.msra.mxu0 0
      %759 = vmatprep.subr.bf16.mxu0 0
      %760 = vmatpush1.bf16.msra.mxu0 0
      %761 = vmatprep.subr.bf16.mxu0 0
      %762 = vmatpush1.bf16.msra.mxu0 0
      %763 = vmatprep.subr.bf16.mxu0 0
      %764 = vmatpush1.bf16.msra.mxu0 0
      %765 = vmatprep.subr.bf16.mxu0 0
      %766 = vmatpush1.bf16.msra.mxu0 0
      %767 = vmatprep.mubr.bf16.mxu0 0
      %768 = vmatmul.mubr.bf16.gmra.mrb[0].mxu0 %v727
      %v769 = vpop.f32.mrb[0].mxu0
      %v770 = vadd.f32 0.0, %v769
      %v771 = vpop.f32.mrb[0].mxu0
      %v772 = vadd.f32 0.0, %v771
      %v773 = vpop.f32.mrb[0].mxu0
      %v774 = vpop.f32.mrb[0].mxu0
      %775 = vdwg.mxu0
      %v776 = vadd.f32 %v376, %v770
      %v777 = vadd.f32 %v378, %v772
      %778 = vrot.lane.b32.xlu0 %v623, 112
      %v779 = vpop.permute.xlu0 %778
      %780 = vrot.lane.b32.xlu0 %v624, 112
      %v781 = vpop.permute.xlu0 %780
      %v782 = vsel %vm631, %v779, %v781
      %v783 = vsel %vm631, %v781, %v779
      %v784 = vsel %vm656, %v782, -inf
      %v785 = vsel %vm657, %v783, -inf
      %v786 = vmax.f32 %v623, %v784
      %v787 = vmax.f32 %v624, %v785
      %788 = vrot.lane.b32.xlu0 %v386, 96
      %v789 = vpop.permute.xlu0 %788
      %790 = vrot.lane.b32.xlu0 %v390, 96
      %v791 = vpop.permute.xlu0 %790
      %vm792 = vcmp.lt.s32.totalorder %v398, 96
      %v793 = vsel %vm792, %v789, %v791
      %v794 = vsel %vm792, %v791, %v789
      %v795 = vsub.f32 %v793, %v386
      %v796 = vsub.f32 %v794, %v390
      %v797 = vand.u32 2147483647, %v795
      %v798 = vand.u32 2147483647, %v796
      %vm799 = vcmp.eq.f32.partialorder %v797, 2.0
      %vm800 = vcmp.eq.f32.partialorder %v798, 2.0
      %801 = vrot.lane.b32.xlu0 %v786, 96
      %v802 = vpop.permute.xlu0 %801
      %803 = vrot.lane.b32.xlu0 %v787, 96
      %v804 = vpop.permute.xlu0 %803
      %v805 = vsel %vm792, %v802, %v804
      %v806 = vsel %vm792, %v804, %v802
      %v807 = vsel %vm799, 1, 0
      %v808 = vsel %vm800, 1, 0
      %v809 = vlaneseq
      %v810 = vshrl.u32 %v809, 7
      %v811 = vsub.s32 0, %v810
      %v812 = vrot.slane %v807, %v811
      %v813 = vlaneseq
      %v814 = vshrl.u32 %v813, 7
      %v815 = vsub.s32 0, %v814
      %v816 = vrot.slane %v808, %v815
      %vm817 = vcmp.eq.s32.totalorder %v812, 1
      %vm818 = vcmp.eq.s32.totalorder %v816, 1
      %v819 = vsel %vm817, %v805, -inf
      %v820 = vsel %vm818, %v806, -inf
      %v821 = vmax.f32 %v786, %v819
      %v822 = vmax.f32 %v787, %v820
      %823 = vrot.lane.b32.xlu0 %v821, 112
      %v824 = vpop.permute.xlu0 %823
      %825 = vrot.lane.b32.xlu0 %v822, 112
      %v826 = vpop.permute.xlu0 %825
      %v827 = vsel %vm631, %v824, %v826
      %v828 = vsel %vm631, %v826, %v824
      %v829 = vsel %vm656, %v827, -inf
      %v830 = vsel %vm657, %v828, -inf
      %v831 = vmax.f32 %v821, %v829
      %v832 = vmax.f32 %v822, %v830
      %833 = vrot.lane.b32.xlu0 %v623, 16
      %v834 = vpop.permute.xlu0 %833
      %835 = vrot.lane.b32.xlu0 %v624, 16
      %v836 = vpop.permute.xlu0 %835
      %v837 = vsel %vm676, %v834, %v836
      %v838 = vsel %vm676, %v836, %v834
      %v839 = vsel %vm701, %v838, -inf
      %v840 = vsel %vm702, %v837, -inf
      %v841 = vmax.f32 %v623, %v839
      %v842 = vmax.f32 %v624, %v840
      %843 = vrot.lane.b32.xlu0 %v386, 32
      %v844 = vpop.permute.xlu0 %843
      %845 = vrot.lane.b32.xlu0 %v390, 32
      %v846 = vpop.permute.xlu0 %845
      %vm847 = vcmp.lt.s32.totalorder %v398, 32
      %v848 = vsel %vm847, %v844, %v846
      %v849 = vsel %vm847, %v846, %v844
      %v850 = vsub.f32 %v849, %v386
      %v851 = vsub.f32 %v848, %v390
      %v852 = vand.u32 2147483647, %v850
      %v853 = vand.u32 2147483647, %v851
      %vm854 = vcmp.eq.f32.partialorder %v852, 2.0
      %vm855 = vcmp.eq.f32.partialorder %v853, 2.0
      %856 = vrot.lane.b32.xlu0 %v841, 32
      %v857 = vpop.permute.xlu0 %856
      %858 = vrot.lane.b32.xlu0 %v842, 32
      %v859 = vpop.permute.xlu0 %858
      %v860 = vsel %vm847, %v857, %v859
      %v861 = vsel %vm847, %v859, %v857
      %v862 = vsel %vm854, 1, 0
      %v863 = vsel %vm855, 1, 0
      %v864 = vlaneseq
      %v865 = vshrl.u32 %v864, 7
      %v866 = vsub.s32 0, %v865
      %v867 = vrot.slane %v862, %v866
      %v868 = vlaneseq
      %v869 = vshrl.u32 %v868, 7
      %v870 = vsub.s32 0, %v869
      %v871 = vrot.slane %v863, %v870
      %vm872 = vcmp.eq.s32.totalorder %v867, 1
      %vm873 = vcmp.eq.s32.totalorder %v871, 1
      %v874 = vsel %vm872, %v861, -inf
      %v875 = vsel %vm873, %v860, -inf
      %v876 = vmax.f32 %v841, %v874
      %v877 = vmax.f32 %v842, %v875
      %878 = vrot.lane.b32.xlu0 %v876, 16
      %v879 = vpop.permute.xlu0 %878
      %880 = vrot.lane.b32.xlu0 %v877, 16
      %v881 = vpop.permute.xlu0 %880
      %v882 = vsel %vm676, %v879, %v881
      %v883 = vsel %vm676, %v881, %v879
      %v884 = vsel %vm701, %v883, -inf
      %v885 = vsel %vm702, %v882, -inf
      %v886 = vmax.f32 %v876, %v884
      %v887 = vmax.f32 %v877, %v885
      %v888 = vmax.f32 %v831, %v886
      %v889 = vmax.f32 %v832, %v887
      %v890 = vpack.c.bf16 %v888, %v888
      %v891 = vpack.c.bf16 %v889, %v889
      %892 = vrot.lane.b32.xlu0 %v723, 120
      %v893 = vpop.permute.xlu0 %892
      %v895 = vsel %vm330, %v893, 0
      %v898 = vsel %vm334, %v890, 0
      %v901 = vsel %vm334, %v891, 0
      %903 = vmatprep.subr.bf16.mxu0 %v901
      %904 = vmatpush1.bf16.msra.mxu0 %v898
      %905 = vmatprep.subr.bf16.mxu0 0
      %906 = vmatpush1.bf16.msra.mxu0 0
      %907 = vmatprep.subr.bf16.mxu0 0
      %908 = vmatpush1.bf16.msra.mxu0 0
      %909 = vmatprep.subr.bf16.mxu0 0
      %910 = vmatpush1.bf16.msra.mxu0 0
      %911 = vmatprep.subr.bf16.mxu0 0
      %912 = vmatpush1.bf16.msra.mxu0 0
      %913 = vmatprep.subr.bf16.mxu0 0
      %914 = vmatpush1.bf16.msra.mxu0 0
      %915 = vmatprep.subr.bf16.mxu0 0
      %916 = vmatpush1.bf16.msra.mxu0 0
      %917 = vmatprep.subr.bf16.mxu0 0
      %918 = vmatpush1.bf16.msra.mxu0 0
      %919 = vmatprep.subr.bf16.mxu0 0
      %920 = vmatpush1.bf16.msra.mxu0 0
      %921 = vmatprep.subr.bf16.mxu0 0
      %922 = vmatpush1.bf16.msra.mxu0 0
      %923 = vmatprep.subr.bf16.mxu0 0
      %924 = vmatpush1.bf16.msra.mxu0 0
      %925 = vmatprep.subr.bf16.mxu0 0
      %926 = vmatpush1.bf16.msra.mxu0 0
      %927 = vmatprep.subr.bf16.mxu0 0
      %928 = vmatpush1.bf16.msra.mxu0 0
      %929 = vmatprep.subr.bf16.mxu0 0
      %930 = vmatpush1.bf16.msra.mxu0 0
      %931 = vmatprep.subr.bf16.mxu0 0
      %932 = vmatpush1.bf16.msra.mxu0 0
      %933 = vmatprep.subr.bf16.mxu0 0
      %934 = vmatpush1.bf16.msra.mxu0 0
      %935 = vmatprep.mubr.bf16.mxu0 0
      %936 = vmatmul.mubr.bf16.gmra.mrb[0].mxu0 %v895
      %v937 = vpop.f32.mrb[0].mxu0
      %v938 = vadd.f32 0.0, %v937
      %v939 = vpop.f32.mrb[0].mxu0
      %v940 = vadd.f32 0.0, %v939
      %v941 = vpop.f32.mrb[0].mxu0
      %v942 = vpop.f32.mrb[0].mxu0
      %943 = vdwg.mxu0
      %v944 = vadd.f32 %v776, %v938
      %v945 = vadd.f32 %v777, %v940
      %946 = vrot.lane.b32.xlu0 %v625, 112
      %v947 = vpop.permute.xlu0 %946
      %948 = vrot.lane.b32.xlu0 %v626, 112
      %v949 = vpop.permute.xlu0 %948
      %v950 = vsel %vm631, %v947, %v949
      %v951 = vsel %vm631, %v949, %v947
      %v952 = vsel %vm656, %v950, -inf
      %v953 = vsel %vm657, %v951, -inf
      %v954 = vmax.f32 %v625, %v952
      %v955 = vmax.f32 %v626, %v953
      %956 = vrot.lane.b32.xlu0 %v954, 96
      %v957 = vpop.permute.xlu0 %956
      %958 = vrot.lane.b32.xlu0 %v955, 96
      %v959 = vpop.permute.xlu0 %958
      %v960 = vsel %vm792, %v957, %v959
      %v961 = vsel %vm792, %v959, %v957
      %v962 = vsel %vm817, %v960, -inf
      %v963 = vsel %vm818, %v961, -inf
      %v964 = vmax.f32 %v954, %v962
      %v965 = vmax.f32 %v955, %v963
      %966 = vrot.lane.b32.xlu0 %v386, 80
      %v967 = vpop.permute.xlu0 %966
      %968 = vrot.lane.b32.xlu0 %v390, 80
      %v969 = vpop.permute.xlu0 %968
      %vm970 = vcmp.lt.s32.totalorder %v398, 80
      %v971 = vsel %vm970, %v967, %v969
      %v972 = vsel %vm970, %v969, %v967
      %v973 = vsub.f32 %v971, %v386
      %v974 = vsub.f32 %v972, %v390
      %v975 = vand.u32 2147483647, %v973
      %v976 = vand.u32 2147483647, %v974
      %vm977 = vcmp.eq.f32.partialorder %v975, 3.0
      %vm978 = vcmp.eq.f32.partialorder %v976, 3.0
      %979 = vrot.lane.b32.xlu0 %v964, 80
      %v980 = vpop.permute.xlu0 %979
      %981 = vrot.lane.b32.xlu0 %v965, 80
      %v982 = vpop.permute.xlu0 %981
      %v983 = vsel %vm970, %v980, %v982
      %v984 = vsel %vm970, %v982, %v980
      %v985 = vsel %vm977, 1, 0
      %v986 = vsel %vm978, 1, 0
      %v987 = vlaneseq
      %v988 = vshrl.u32 %v987, 7
      %v989 = vsub.s32 0, %v988
      %v990 = vrot.slane %v985, %v989
      %v991 = vlaneseq
      %v992 = vshrl.u32 %v991, 7
      %v993 = vsub.s32 0, %v992
      %v994 = vrot.slane %v986, %v993
      %vm995 = vcmp.eq.s32.totalorder %v990, 1
      %vm996 = vcmp.eq.s32.totalorder %v994, 1
      %v997 = vsel %vm995, %v983, -inf
      %v998 = vsel %vm996, %v984, -inf
      %v999 = vmax.f32 %v964, %v997
      %v1000 = vmax.f32 %v965, %v998
      %1001 = vrot.lane.b32.xlu0 %v625, 16
      %v1002 = vpop.permute.xlu0 %1001
      %1003 = vrot.lane.b32.xlu0 %v626, 16
      %v1004 = vpop.permute.xlu0 %1003
      %v1005 = vsel %vm676, %v1002, %v1004
      %v1006 = vsel %vm676, %v1004, %v1002
      %v1007 = vsel %vm701, %v1006, -inf
      %v1008 = vsel %vm702, %v1005, -inf
      %v1009 = vmax.f32 %v625, %v1007
      %v1010 = vmax.f32 %v626, %v1008
      %1011 = vrot.lane.b32.xlu0 %v1009, 32
      %v1012 = vpop.permute.xlu0 %1011
      %1013 = vrot.lane.b32.xlu0 %v1010, 32
      %v1014 = vpop.permute.xlu0 %1013
      %v1015 = vsel %vm847, %v1012, %v1014
      %v1016 = vsel %vm847, %v1014, %v1012
      %v1017 = vsel %vm872, %v1016, -inf
      %v1018 = vsel %vm873, %v1015, -inf
      %v1019 = vmax.f32 %v1009, %v1017
      %v1020 = vmax.f32 %v1010, %v1018
      %1021 = vrot.lane.b32.xlu0 %v386, 48
      %v1022 = vpop.permute.xlu0 %1021
      %1023 = vrot.lane.b32.xlu0 %v390, 48
      %v1024 = vpop.permute.xlu0 %1023
      %vm1025 = vcmp.lt.s32.totalorder %v398, 48
      %v1026 = vsel %vm1025, %v1022, %v1024
      %v1027 = vsel %vm1025, %v1024, %v1022
      %v1028 = vsub.f32 %v1027, %v386
      %v1029 = vsub.f32 %v1026, %v390
      %v1030 = vand.u32 2147483647, %v1028
      %v1031 = vand.u32 2147483647, %v1029
      %vm1032 = vcmp.eq.f32.partialorder %v1030, 3.0
      %vm1033 = vcmp.eq.f32.partialorder %v1031, 3.0
      %1034 = vrot.lane.b32.xlu0 %v1019, 48
      %v1035 = vpop.permute.xlu0 %1034
      %1036 = vrot.lane.b32.xlu0 %v1020, 48
      %v1037 = vpop.permute.xlu0 %1036
      %v1038 = vsel %vm1025, %v1035, %v1037
      %v1039 = vsel %vm1025, %v1037, %v1035
      %v1040 = vsel %vm1032, 1, 0
      %v1041 = vsel %vm1033, 1, 0
      %v1042 = vlaneseq
      %v1043 = vshrl.u32 %v1042, 7
      %v1044 = vsub.s32 0, %v1043
      %v1045 = vrot.slane %v1040, %v1044
      %v1046 = vlaneseq
      %v1047 = vshrl.u32 %v1046, 7
      %v1048 = vsub.s32 0, %v1047
      %v1049 = vrot.slane %v1041, %v1048
      %vm1050 = vcmp.eq.s32.totalorder %v1045, 1
      %vm1051 = vcmp.eq.s32.totalorder %v1049, 1
      %v1052 = vsel %vm1050, %v1039, -inf
      %v1053 = vsel %vm1051, %v1038, -inf
      %v1054 = vmax.f32 %v1019, %v1052
      %v1055 = vmax.f32 %v1020, %v1053
      %v1056 = vmax.f32 %v999, %v1054
      %v1057 = vmax.f32 %v1000, %v1055
      %v1058 = vpack.c.bf16 %v1056, %v1056
      %v1059 = vpack.c.bf16 %v1057, %v1057
      %1060 = vrot.lane.b32.xlu0 %v723, 116
      %v1061 = vpop.permute.xlu0 %1060
      %v1063 = vsel %vm330, %v1061, 0
      %v1066 = vsel %vm334, %v1058, 0
      %v1069 = vsel %vm334, %v1059, 0
      %1071 = vmatprep.subr.bf16.mxu0 %v1069
      %1072 = vmatpush1.bf16.msra.mxu0 %v1066
      %1073 = vmatprep.subr.bf16.mxu0 0
      %1074 = vmatpush1.bf16.msra.mxu0 0
      %1075 = vmatprep.subr.bf16.mxu0 0
      %1076 = vmatpush1.bf16.msra.mxu0 0
      %1077 = vmatprep.subr.bf16.mxu0 0
      %1078 = vmatpush1.bf16.msra.mxu0 0
      %1079 = vmatprep.subr.bf16.mxu0 0
      %1080 = vmatpush1.bf16.msra.mxu0 0
      %1081 = vmatprep.subr.bf16.mxu0 0
      %1082 = vmatpush1.bf16.msra.mxu0 0
      %1083 = vmatprep.subr.bf16.mxu0 0
      %1084 = vmatpush1.bf16.msra.mxu0 0
      %1085 = vmatprep.subr.bf16.mxu0 0
      %1086 = vmatpush1.bf16.msra.mxu0 0
      %1087 = vmatprep.subr.bf16.mxu0 0
      %1088 = vmatpush1.bf16.msra.mxu0 0
      %1089 = vmatprep.subr.bf16.mxu0 0
      %1090 = vmatpush1.bf16.msra.mxu0 0
      %1091 = vmatprep.subr.bf16.mxu0 0
      %1092 = vmatpush1.bf16.msra.mxu0 0
      %1093 = vmatprep.subr.bf16.mxu0 0
      %1094 = vmatpush1.bf16.msra.mxu0 0
      %1095 = vmatprep.subr.bf16.mxu0 0
      %1096 = vmatpush1.bf16.msra.mxu0 0
      %1097 = vmatprep.subr.bf16.mxu0 0
      %1098 = vmatpush1.bf16.msra.mxu0 0
      %1099 = vmatprep.subr.bf16.mxu0 0
      %1100 = vmatpush1.bf16.msra.mxu0 0
      %1101 = vmatprep.subr.bf16.mxu0 0
      %1102 = vmatpush1.bf16.msra.mxu0 0
      %1103 = vmatprep.mubr.bf16.mxu0 0
      %1104 = vmatmul.mubr.bf16.gmra.mrb[0].mxu0 %v1063
      %v1105 = vpop.f32.mrb[0].mxu0
      %v1106 = vadd.f32 0.0, %v1105
      %v1107 = vpop.f32.mrb[0].mxu0
      %v1108 = vadd.f32 0.0, %v1107
      %v1109 = vpop.f32.mrb[0].mxu0
      %v1110 = vpop.f32.mrb[0].mxu0
      %1111 = vdwg.mxu0
      %v1112 = vadd.f32 %v944, %v1106
      %v1113 = vadd.f32 %v945, %v1108
      %v1114 = vmul.f32 %v1112, 0.1
      %v1115 = vmul.f32 %v1113, 0.1
      %v1116 = vmax.f32 %v1112, %v1114
      %v1117 = vmax.f32 %v1113, %v1115
      %1118 = vst [vmem:[%s251] sm:$0xff] %v1116
      %1119 = vst [vmem:[%s251 + $0x8] sm:$0xff] %v1117
      %p1120 = scmp.lt.s32.totalorder %s17, 1
      %s1121 = scalar_select %p1120, %s17, 1
      %s1122 = smul.addr %s1121, 2
      %s1123 = smul.addr %s1122, 8
      %s1124 = scalar_lea.vmem %s6, %s1123
      // Predicated region
      $region45: #{spp_bottleneck.1} parent=43 // pred_check
        %p1125 = pneg %p166
      $region46: #{spp_bottleneck.1} parent=43 // pred_check_branch
        %1127 = sbr.rel (%p1125) target = $region48
      $region47: #{spp_bottleneck.1} parent=43 // pred_region
        _
      $region48: #{spp_bottleneck.1} parent=43 // pred_fallthru
        _
    $region44: #{spp_bottleneck.1} parent=5 // pred_fallthru
      _
    %p1128 = scmp.le.s32.totalorder 2, %s12
    // Predicated region
    $region49: #{spp_bottleneck.1} parent=5 // pred_check
      %p1129 = pneg %p1128
    $region50: #{spp_bottleneck.1} parent=5 // pred_check_branch
      %1131 = sbr.rel (%p1129) target = $region52
    $region51: #{spp_bottleneck.1} parent=5 // pred_region
      %s1132 = ssub.s32 %s12, 2
      // Predicated region
      $region53: #{spp_bottleneck.1} parent=51 // pred_check
        %p1133 = pneg %p172
      $region54: #{spp_bottleneck.1} parent=51 // pred_check_branch
        %1135 = sbr.rel (%p1133) target = $region56
      $region55: #{spp_bottleneck.1} parent=51 // pred_region
        %p1136 = scmp.lt.s32.totalorder %s18, 1
        %s1137 = scalar_select %p1136, %s18, 1
        %s1138 = smul.addr %s1137, 2
        %s1139 = smul.addr %s1138, 8
        %s1140 = scalar_lea.vmem %s6, %s1139
      $region56: #{spp_bottleneck.1} parent=51 // pred_fallthru
        _
    $region52: #{spp_bottleneck.1} parent=5 // pred_fallthru
      _
  $region6: #{spp_bottleneck.1} parent=0 // loop_footer
    %s16 = sadd.s32 1, %s12
  $region7: #{spp_bottleneck.1} parent=0 // loop_footer_branch
    %11 = sbr.rel target = $region3
  $region8: #{spp_bottleneck.1} parent=0 // loop_exit
    _

</llo_original>
